<compile_context>
chip_gen: v6e
topology: v6e:2x2x1
jax: 0.10.0
libtpu: 0.0.40
codegen_flags: <defaults>
</compile_context>

<pallas_src>
import functools

import jax
import jax.numpy as jnp
from jax.experimental import pallas as pl
from jax.experimental.pallas import tpu as pltpu


def _round_up(x, m):
    return (x + m - 1) // m * m


_VMEM = pl.BlockSpec(memory_space=pltpu.MemorySpace.VMEM)


# ------------------------------ Pallas kernels -------------------------------
def _input_layer_kernel(x_ref, w_ref, b_ref, o_ref):
    # (Np, Cin) @ (Cin, k*k*Cout) + bias, ReLU.  Output lanes = k*k*Cout (dense).
    y = jnp.dot(x_ref[...], w_ref[...], preferred_element_type=jnp.float32)
    y = y + b_ref[...]
    o_ref[...] = jnp.maximum(y, 0.0)


def _convt_layer_kernel(wt_ref, pt_ref, bias_ref, gamma_ref, beta_ref, o_ref, *,
                        use_bn: bool, activation: str, eps: float,
                        inv_count: float):
    """Per-phase GEMM (Cout, K) @ (K, M) + fused BatchNorm + activation.

    wt_ref:    (P, Cout_p, K)    bf16  transposed per-phase sub-kernels
    pt_ref:    (P, K, M_p)       bf16  transposed per-phase patches (zero-free)
    bias_ref:  (Cout_p, 1)       f32   conv bias (only read when use_bn=False)
    gamma_ref: (Cout_p, 1)       f32   BN weight   (only read when use_bn=True)
    beta_ref:  (Cout_p, 1)       f32   BN bias     (only read when use_bn=True)
    o_ref:     (P, Cout_p, M_p)  f32   lane-dense output (M in lanes)
    """
    nph = wt_ref.shape[0]

    if use_bn:
        # Pass 1: matmuls + one-pass per-channel sums.  The conv bias is skipped
        # here because it is cancelled exactly by the mean subtraction below.
        s1 = None
        s2 = None
        for ph in range(nph):
            y = jnp.dot(wt_ref[ph], pt_ref[ph],
                        preferred_element_type=jnp.float32)
            o_ref[ph] = y
            ys = jnp.sum(y, axis=1, keepdims=True)
            y2 = jnp.sum(y * y, axis=1, keepdims=True)
            s1 = ys if s1 is None else s1 + ys
            s2 = y2 if s2 is None else s2 + y2
        mean = s1 * inv_count
        var = s2 * inv_count - mean * mean        # biased variance (training)
        scale = gamma_ref[...] * jax.lax.rsqrt(var + eps)
        shift = beta_ref[...] - mean * scale
        # Pass 2: folded normalize (one mul + one add) + activation.
        for ph in range(nph):
            y = o_ref[ph] * scale + shift
            if activation == "relu":
                y = jnp.maximum(y, 0.0)
            elif activation == "tanh":
                y = jnp.tanh(y)
            o_ref[ph] = y
    else:
        for ph in range(nph):
            y = jnp.dot(wt_ref[ph], pt_ref[ph],
                        preferred_element_type=jnp.float32)
            y = y + bias_ref[...]
            if activation == "relu":
                y = jnp.maximum(y, 0.0)
            elif activation == "tanh":
                y = jnp.tanh(y)
            o_ref[ph] = y


# ------------------------------ layer wrappers --------------------------------
def _input_layer_fused(x_nchw, w, b):
    """Layer-1 specialization: ConvTranspose2d on a 1x1 input is a plain GEMM
    (N, Cin) @ (Cin, Cout*k*k) followed by ReLU.  No im2col, no zeros."""
    n, cin = x_nchw.shape[0], x_nchw.shape[1]
    cout, k = w.shape[1], w.shape[2]
    np_ = _round_up(max(n, 1), 8)

    x2 = jnp.pad(x_nchw.reshape(n, cin), ((0, np_ - n), (0, 0)))
    x2 = x2.astype(jnp.bfloat16)
    # column order (kh, kw, cout) so the result reshapes directly to NHWC
    w2 = jnp.transpose(w, (0, 2, 3, 1)).reshape(cin, k * k * cout)
    w2 = w2.astype(jnp.bfloat16)
    b2 = jnp.tile(b.astype(jnp.float32), k * k).reshape(1, k * k * cout)

    cost = pl.CostEstimate(
        flops=2 * np_ * cin * k * k * cout,
        transcendentals=0,
        bytes_accessed=int(x2.size * 2 + w2.size * 2 + b2.size * 4
                           + np_ * k * k * cout * 4))
    out = pl.pallas_call(
        _input_layer_kernel,
        out_shape=jax.ShapeDtypeStruct((np_, k * k * cout), jnp.float32),
        in_specs=[_VMEM, _VMEM, _VMEM],
        out_specs=_VMEM,
        cost_estimate=cost,
    )(x2, w2, b2)
    return out[:n].reshape(n, k, k, cout)        # NHWC, spatial = k x k


def _conv_transpose_fused(x_nhwc, w, b, gamma, beta, *, stride, padding,
                          use_bn, activation, eps=1e-5):
    """Fused ConvTranspose2d (+ training-mode BatchNorm2d) (+ ReLU/Tanh).

    x_nhwc: (N, H, W, Cin) channels-last activation.
    w:      (Cin, Cout, k, k) PyTorch ConvTranspose2d weight layout.
    Sub-pixel (phase) decomposition: for stride s the output splits into s*s
    phases, each an ordinary dense GEMM with a (k/s)x(k/s) sub-kernel, so no
    dilation/padding zeros are ever multiplied on the MXU.
    """
    n, hi, wi, cin = x_nhwc.shape
    cout, k = w.shape[1], w.shape[2]
    s, p = stride, padding
    assert k % s == 0, "kernel size must be divisible by stride"
    ho = (hi - 1) * s - 2 * p + k
    wo = (wi - 1) * s - 2 * p + k
    assert ho % s == 0 and wo % s == 0
    t = k // s                        # taps per spatial dim per phase
    hs, ws = ho // s, wo // s         # per-phase output spatial size
    nph = s * s
    m = n * hs * ws                   # per-phase GEMM width (lane dim)
    kdim = t * t * cin                # contraction size
    cs = [(a + p) // s for a in range(s)]
    rs = [(a + p) % s for a in range(s)]
    pad_lo = max([0] + [t - 1 - c for c in cs])
    pad_hi_h = max([0] + [hs - 1 + c - (hi - 1) for c in cs])
    pad_hi_w = max([0] + [ws - 1 + c - (wi - 1) for c in cs])

    xp = jnp.pad(x_nhwc,
                 ((0, 0), (pad_lo, pad_hi_h), (pad_lo, pad_hi_w), (0, 0)))
    xcf = jnp.transpose(xp, (3, 0, 1, 2))        # (Cin, N, Hp, Wp), once/layer

    pt_list, wt_list = [], []
    for a in range(s):                # output row parity
        for bp in range(s):           # output col parity
            ca, ra = cs[a], rs[a]
            cb, rb = cs[bp], rs[bp]
            taps = []
            for th in range(t):
                for tw in range(t):
                    sh0 = ca - th + pad_lo
                    sw0 = cb - tw + pad_lo
                    taps.append(xcf[:, :, sh0:sh0 + hs, sw0:sw0 + ws])
            # (t*t, Cin, N, Hs, Ws) -> (K, M): transposed patches for this phase
            pt_list.append(jnp.stack(taps, axis=0).reshape(kdim, m))
            # matching sub-kernel, ordered (cout) x (th, tw, cin)
            wph = w[:, :, ra::s, rb::s]                      # (Cin, Cout, t, t)
            wt_list.append(jnp.transpose(wph, (1, 2, 3, 0)).reshape(cout, kdim))

    m_p = _round_up(m, 128)           # lane-dense, unmasked stores
    cout_p = _round_up(cout, 8)       # full sublanes
    pt = jnp.pad(jnp.stack(pt_list, 0), ((0, 0), (0, 0), (0, m_p - m)))
    pt = pt.astype(jnp.bfloat16)
    wt = jnp.pad(jnp.stack(wt_list, 0), ((0, 0), (0, cout_p - cout), (0, 0)))
    wt = wt.astype(jnp.bfloat16)
    bias2 = jnp.pad(b.astype(jnp.float32), (0, cout_p - cout)).reshape(cout_p, 1)
    gamma2 = jnp.pad(gamma.astype(jnp.float32), (0, cout_p - cout),
                     constant_values=1.0).reshape(cout_p, 1)
    beta2 = jnp.pad(beta.astype(jnp.float32),
                    (0, cout_p - cout)).reshape(cout_p, 1)

    kern = functools.partial(_convt_layer_kernel, use_bn=use_bn,
                             activation=activation, eps=eps,
                             inv_count=1.0 / float(nph * m))
    cost = pl.CostEstimate(
        flops=2 * nph * cout * kdim * m,
        transcendentals=(nph * cout * m if activation == "tanh" else 0),
        bytes_accessed=int(pt.size * 2 + wt.size * 2 + 3 * cout_p * 4
                           + nph * cout_p * m_p * 4))
    out = pl.pallas_call(
        kern,
        out_shape=jax.ShapeDtypeStruct((nph, cout_p, m_p), jnp.float32),
        in_specs=[_VMEM] * 5,
        out_specs=_VMEM,
        cost_estimate=cost,
    )(wt, pt, bias2, gamma2, beta2)

    # (s*s, Cout, N*Hs*Ws) -> interleave the phases -> (N, Ho, Wo, Cout)
    out = out[:, :cout, :m].reshape(s, s, cout, n, hs, ws)
    out = out.transpose(3, 4, 0, 5, 1, 2).reshape(n, ho, wo, cout)
    return out


# --------------------------------- Generator ---------------------------------
def init_generator_params(key, noise_channels, image_channels, features):
    chans = [noise_channels, features * 8, features * 4, features * 2,
             image_channels]
    params = []
    for li in range(4):
        key, kw, kb = jax.random.split(key, 3)
        cin, cout = chans[li], chans[li + 1]
        w = 0.05 * jax.random.normal(kw, (cin, cout, 4, 4), jnp.float32)
        b = 0.05 * jax.random.normal(kb, (cout,), jnp.float32)
        gamma = jnp.ones((cout,), jnp.float32)    # BatchNorm weight init
        beta = jnp.zeros((cout,), jnp.float32)    # BatchNorm bias init
        params.append((w, b, gamma, beta))
    return params


_LAYER_CFG = [  # (stride, padding, use_bn, activation) — matches nn.Sequential
    (1, 0, False, "relu"),
    (1, 0, True, "relu"),
    (2, 1, True, "relu"),
    (2, 1, False, "tanh"),
]


def generator_forward(params, x):
    """x: (N, noise_channels, H, W) NCHW, typically H = W = 1 (DCGAN noise)."""
    w1, b1, g1, be1 = params[0]
    s1, p1, bn1, act1 = _LAYER_CFG[0]
    if x.shape[2] == 1 and x.shape[3] == 1 and s1 == 1 and p1 == 0 and not bn1:
        h = _input_layer_fused(x, w1, b1)                    # specialized path
    else:
        h = _conv_transpose_fused(jnp.transpose(x, (0, 2, 3, 1)), w1, b1, g1,
                                  be1, stride=s1, padding=p1, use_bn=bn1,
                                  activation=act1)
    for (w, b, g, be), (s, p, bn, act) in zip(params[1:], _LAYER_CFG[1:]):
        h = _conv_transpose_fused(h, w, b, g, be, stride=s, padding=p,
                                  use_bn=bn, activation=act)
    return jnp.transpose(h, (0, 3, 1, 2))                    # NCHW once at exit


# ----------------------- pure-JAX reference (for checking) --------------------
def _ref_conv_transpose(x, w, b, stride, padding):
    """Dilate-by-stride, pad by k-1-p, flip kernel, stride-1 correlation."""
    n, cin, h, wsp = x.shape
    k, cout = w.shape[2], w.shape[1]
    s, p = stride, padding
    hd, wd = (h - 1) * s + 1, (wsp - 1) * s + 1
    xd = jnp.zeros((n, cin, hd, wd), x.dtype).at[:, :, ::s, ::s].set(x)
    pad = k - 1 - p
    xpd = jnp.pad(xd, ((0, 0), (0, 0), (pad, pad), (pad, pad)))
    ho, wo = xpd.shape[2] - k + 1, xpd.shape[3] - k + 1
    pats = jnp.stack([xpd[:, :, i:i + ho, j:j + wo]
                      for i in range(k) for j in range(k)], axis=2)
    wr = jnp.transpose(w[:, :, ::-1, ::-1], (0, 2, 3, 1)).reshape(cin, k * k,
                                                                  cout)
    out = jnp.einsum('nckhw,cko->nohw', pats, wr)
    return out + b.reshape(1, cout, 1, 1)


def _ref_generator_forward(params, x):
    h = x
    for (w, b, g, be), (s, p, bn, act) in zip(params, _LAYER_CFG):
        h = _ref_conv_transpose(h, w, b, s, p)
        if bn:
            mean = jnp.mean(h, axis=(0, 2, 3), keepdims=True)
            var = jnp.mean((h - mean) ** 2, axis=(0, 2, 3), keepdims=True)
            h = ((h - mean) * jax.lax.rsqrt(var + 1e-5)
                 * g.reshape(1, -1, 1, 1) + be.reshape(1, -1, 1, 1))
        h = jnp.maximum(h, 0.0) if act == "relu" else jnp.tanh(h)
    return h


if __name__ == "__main__":
    # small-but-consistent shapes: noise_channels=32, image_channels=1, features=8
    NOISE_CH, IMG_CH, FEATS, BATCH = 32, 1, 8, 2

    key = jax.random.PRNGKey(0)
    key, kx = jax.random.split(key)
    params = init_generator_params(key, NOISE_CH, IMG_CH, FEATS)
    x = jax.random.normal(kx, (BATCH, NOISE_CH, 1, 1), jnp.float32)

    out = jax.block_until_ready(jax.jit(generator_forward)(params, x))
    ref = jax.block_until_ready(jax.jit(_ref_generator_forward)(params, x))

    assert out.shape == (BATCH, IMG_CH, 28, 28), out.shape
    assert out.dtype == jnp.float32
    assert bool(jnp.all(jnp.isfinite(out)))
    assert bool(jnp.all(jnp.abs(out) <= 1.0))            # tanh output range
    max_err = float(jnp.max(jnp.abs(out - ref)))
    # bf16 MXU operands (f32 accumulation) -> small numerical drift vs f32 ref.
    assert max_err < 6e-2, f"mismatch vs reference: max abs err {max_err}"
    print("KERNEL_OK")
</pallas_src>

<mosaic_0001>
module attributes {stable_mosaic.version = 11 : i64} {
  func.func @_input_layer_kernel(%arg0: memref<8x32xbf16, #tpu.memory_space<vmem>>, %arg1: memref<32x1024xbf16, #tpu.memory_space<vmem>>, %arg2: memref<1x1024xf32, #tpu.memory_space<vmem>>, %arg3: memref<8x1024xf32, #tpu.memory_space<vmem>>) attributes {dimension_semantics = [], scalar_prefetch = 0 : i64, scratch_operands = 0 : i64, tpu.core_type = #tpu.core_type<tc>} {
    %c0 = arith.constant 0 : index
    %c0_0 = arith.constant 0 : index
    %0 = vector.load %arg0[%c0, %c0_0] : memref<8x32xbf16, #tpu.memory_space<vmem>>, vector<8x32xbf16>
    %c0_1 = arith.constant 0 : index
    %c0_2 = arith.constant 0 : index
    %1 = vector.load %arg1[%c0_1, %c0_2] : memref<32x1024xbf16, #tpu.memory_space<vmem>>, vector<32x1024xbf16>
    %cst = arith.constant dense<0.000000e+00> : vector<8x1024xf32>
    %2 = tpu.matmul %0, %1, %cst {dimension_numbers = #tpu.dot_dimension_numbers<[1], [0], [0], [1], [0, 0, 1, 1], [], []>} : vector<8x32xbf16>, vector<32x1024xbf16>, vector<8x1024xf32> -> vector<8x1024xf32>
    %c0_3 = arith.constant 0 : index
    %c0_4 = arith.constant 0 : index
    %3 = vector.load %arg2[%c0_3, %c0_4] : memref<1x1024xf32, #tpu.memory_space<vmem>>, vector<1x1024xf32>
    %4 = vector.broadcast %3 : vector<1x1024xf32> to vector<8x1024xf32>
    %5 = arith.addf %2, %4 : vector<8x1024xf32>
    %cst_5 = arith.constant 0.000000e+00 : f32
    %6 = vector.broadcast %cst_5 : f32 to vector<8x1024xf32>
    %7 = arith.maximumf %5, %6 : vector<8x1024xf32>
    %c0_6 = arith.constant 0 : index
    %c0_7 = arith.constant 0 : index
    %8 = vector.load %arg3[%c0_6, %c0_7] : memref<8x1024xf32, #tpu.memory_space<vmem>>, vector<8x1024xf32>
    tpu.vector_store %arg3[%c0_6, %c0_7], %7 {strides = array<i32>} : memref<8x1024xf32, #tpu.memory_space<vmem>>, vector<8x1024xf32>,
    return
  }
}

module attributes {stable_mosaic.version = 11 : i64} {
  func.func @_convt_layer_kernel(%arg0: memref<1x32x1024xbf16, #tpu.memory_space<vmem>>, %arg1: memref<1x1024x128xbf16, #tpu.memory_space<vmem>>, %arg2: memref<32x1xf32, #tpu.memory_space<vmem>>, %arg3: memref<32x1xf32, #tpu.memory_space<vmem>>, %arg4: memref<32x1xf32, #tpu.memory_space<vmem>>, %arg5: memref<1x32x128xf32, #tpu.memory_space<vmem>>) attributes {dimension_semantics = [], scalar_prefetch = 0 : i64, scratch_operands = 0 : i64, tpu.core_type = #tpu.core_type<tc>} {
    %c0 = arith.constant 0 : index
    %c0_0 = arith.constant 0 : index
    %c0_1 = arith.constant 0 : index
    %0 = vector.load %arg0[%c0, %c0_0, %c0_1] : memref<1x32x1024xbf16, #tpu.memory_space<vmem>>, vector<1x32x1024xbf16>
    %1 = vector.shape_cast %0 : vector<1x32x1024xbf16> to vector<32x1024xbf16>
    %c0_2 = arith.constant 0 : index
    %c0_3 = arith.constant 0 : index
    %c0_4 = arith.constant 0 : index
    %2 = vector.load %arg1[%c0_2, %c0_3, %c0_4] : memref<1x1024x128xbf16, #tpu.memory_space<vmem>>, vector<1x1024x128xbf16>
    %3 = vector.shape_cast %2 : vector<1x1024x128xbf16> to vector<1024x128xbf16>
    %cst = arith.constant dense<0.000000e+00> : vector<32x128xf32>
    %4 = tpu.matmul %1, %3, %cst {dimension_numbers = #tpu.dot_dimension_numbers<[1], [0], [0], [1], [0, 0, 1, 1], [], []>} : vector<32x1024xbf16>, vector<1024x128xbf16>, vector<32x128xf32> -> vector<32x128xf32>
    %c0_5 = arith.constant 0 : index
    %c0_6 = arith.constant 0 : index
    %c0_7 = arith.constant 0 : index
    %5 = vector.load %arg5[%c0_5, %c0_6, %c0_7] : memref<1x32x128xf32, #tpu.memory_space<vmem>>, vector<1x32x128xf32>
    %6 = vector.shape_cast %5 : vector<1x32x128xf32> to vector<32x128xf32>
    %7 = vector.shape_cast %4 : vector<32x128xf32> to vector<1x32x128xf32>
    tpu.vector_store %arg5[%c0_5, %c0_6, %c0_7], %7 {strides = array<i32>} : memref<1x32x128xf32, #tpu.memory_space<vmem>>, vector<1x32x128xf32>,
    %cst_8 = arith.constant dense<0.000000e+00> : vector<32xf32>
    %8 = vector.multi_reduction <add>, %4, %cst_8 [1] : vector<32x128xf32> to vector<32xf32>
    %9 = vector.shape_cast %8 : vector<32xf32> to vector<32x1xf32>
    %10 = arith.mulf %4, %4 : vector<32x128xf32>
    %cst_9 = arith.constant dense<0.000000e+00> : vector<32xf32>
    %11 = vector.multi_reduction <add>, %10, %cst_9 [1] : vector<32x128xf32> to vector<32xf32>
    %12 = vector.shape_cast %11 : vector<32xf32> to vector<32x1xf32>
    %cst_10 = arith.constant 0.0102040814 : f32
    %13 = vector.broadcast %cst_10 : f32 to vector<32x1xf32>
    %14 = arith.mulf %9, %13 : vector<32x1xf32>
    %cst_11 = arith.constant 0.0102040814 : f32
    %15 = vector.broadcast %cst_11 : f32 to vector<32x1xf32>
    %16 = arith.mulf %12, %15 : vector<32x1xf32>
    %17 = arith.mulf %14, %14 : vector<32x1xf32>
    %18 = arith.subf %16, %17 : vector<32x1xf32>
    %c0_12 = arith.constant 0 : index
    %c0_13 = arith.constant 0 : index
    %19 = vector.load %arg3[%c0_12, %c0_13] : memref<32x1xf32, #tpu.memory_space<vmem>>, vector<32x1xf32>
    %cst_14 = arith.constant 9.99999974E-6 : f32
    %20 = vector.broadcast %cst_14 : f32 to vector<32x1xf32>
    %21 = arith.addf %18, %20 : vector<32x1xf32>
    %22 = math.rsqrt %21 : vector<32x1xf32>
    %23 = arith.mulf %19, %22 : vector<32x1xf32>
    %c0_15 = arith.constant 0 : index
    %c0_16 = arith.constant 0 : index
    %24 = vector.load %arg4[%c0_15, %c0_16] : memref<32x1xf32, #tpu.memory_space<vmem>>, vector<32x1xf32>
    %25 = arith.mulf %14, %23 : vector<32x1xf32>
    %26 = arith.subf %24, %25 : vector<32x1xf32>
    %c0_17 = arith.constant 0 : index
    %c0_18 = arith.constant 0 : index
    %c0_19 = arith.constant 0 : index
    %27 = vector.load %arg5[%c0_17, %c0_18, %c0_19] : memref<1x32x128xf32, #tpu.memory_space<vmem>>, vector<1x32x128xf32>
    %28 = vector.shape_cast %27 : vector<1x32x128xf32> to vector<32x128xf32>
    %29 = vector.broadcast %23 : vector<32x1xf32> to vector<32x128xf32>
    %30 = arith.mulf %28, %29 : vector<32x128xf32>
    %31 = vector.broadcast %26 : vector<32x1xf32> to vector<32x128xf32>
    %32 = arith.addf %30, %31 : vector<32x128xf32>
    %cst_20 = arith.constant 0.000000e+00 : f32
    %33 = vector.broadcast %cst_20 : f32 to vector<32x128xf32>
    %34 = arith.maximumf %32, %33 : vector<32x128xf32>
    %c0_21 = arith.constant 0 : index
    %c0_22 = arith.constant 0 : index
    %c0_23 = arith.constant 0 : index
    %35 = vector.load %arg5[%c0_21, %c0_22, %c0_23] : memref<1x32x128xf32, #tpu.memory_space<vmem>>, vector<1x32x128xf32>
    %36 = vector.shape_cast %35 : vector<1x32x128xf32> to vector<32x128xf32>
    %37 = vector.shape_cast %34 : vector<32x128xf32> to vector<1x32x128xf32>
    tpu.vector_store %arg5[%c0_21, %c0_22, %c0_23], %37 {strides = array<i32>} : memref<1x32x128xf32, #tpu.memory_space<vmem>>, vector<1x32x128xf32>,
    return
  }
}

module attributes {stable_mosaic.version = 11 : i64} {
  func.func @_convt_layer_kernel(%arg0: memref<4x16x128xbf16, #tpu.memory_space<vmem>>, %arg1: memref<4x128x128xbf16, #tpu.memory_space<vmem>>, %arg2: memref<16x1xf32, #tpu.memory_space<vmem>>, %arg3: memref<16x1xf32, #tpu.memory_space<vmem>>, %arg4: memref<16x1xf32, #tpu.memory_space<vmem>>, %arg5: memref<4x16x128xf32, #tpu.memory_space<vmem>>) attributes {dimension_semantics = [], scalar_prefetch = 0 : i64, scratch_operands = 0 : i64, tpu.core_type = #tpu.core_type<tc>} {
    %c0 = arith.constant 0 : index
    %c0_0 = arith.constant 0 : index
    %c0_1 = arith.constant 0 : index
    %0 = vector.load %arg0[%c0, %c0_0, %c0_1] : memref<4x16x128xbf16, #tpu.memory_space<vmem>>, vector<1x16x128xbf16>
    %1 = vector.shape_cast %0 : vector<1x16x128xbf16> to vector<16x128xbf16>
    %c0_2 = arith.constant 0 : index
    %c0_3 = arith.constant 0 : index
    %c0_4 = arith.constant 0 : index
    %2 = vector.load %arg1[%c0_2, %c0_3, %c0_4] : memref<4x128x128xbf16, #tpu.memory_space<vmem>>, vector<1x128x128xbf16>
    %3 = vector.shape_cast %2 : vector<1x128x128xbf16> to vector<128x128xbf16>
    %cst = arith.constant dense<0.000000e+00> : vector<16x128xf32>
    %4 = tpu.matmul %1, %3, %cst {dimension_numbers = #tpu.dot_dimension_numbers<[1], [0], [0], [1], [0, 0, 1, 1], [], []>} : vector<16x128xbf16>, vector<128x128xbf16>, vector<16x128xf32> -> vector<16x128xf32>
    %c0_5 = arith.constant 0 : index
    %c0_6 = arith.constant 0 : index
    %c0_7 = arith.constant 0 : index
    %5 = vector.load %arg5[%c0_5, %c0_6, %c0_7] : memref<4x16x128xf32, #tpu.memory_space<vmem>>, vector<1x16x128xf32>
    %6 = vector.shape_cast %5 : vector<1x16x128xf32> to vector<16x128xf32>
    %7 = vector.shape_cast %4 : vector<16x128xf32> to vector<1x16x128xf32>
    tpu.vector_store %arg5[%c0_5, %c0_6, %c0_7], %7 {strides = array<i32>} : memref<4x16x128xf32, #tpu.memory_space<vmem>>, vector<1x16x128xf32>,
    %cst_8 = arith.constant dense<0.000000e+00> : vector<16xf32>
    %8 = vector.multi_reduction <add>, %4, %cst_8 [1] : vector<16x128xf32> to vector<16xf32>
    %9 = vector.shape_cast %8 : vector<16xf32> to vector<16x1xf32>
    %10 = arith.mulf %4, %4 : vector<16x128xf32>
    %cst_9 = arith.constant dense<0.000000e+00> : vector<16xf32>
    %11 = vector.multi_reduction <add>, %10, %cst_9 [1] : vector<16x128xf32> to vector<16xf32>
    %12 = vector.shape_cast %11 : vector<16xf32> to vector<16x1xf32>
    %c1 = arith.constant 1 : index
    %c0_10 = arith.constant 0 : index
    %c0_11 = arith.constant 0 : index
    %13 = vector.load %arg0[%c1, %c0_10, %c0_11] : memref<4x16x128xbf16, #tpu.memory_space<vmem>>, vector<1x16x128xbf16>
    %14 = vector.shape_cast %13 : vector<1x16x128xbf16> to vector<16x128xbf16>
    %c1_12 = arith.constant 1 : index
    %c0_13 = arith.constant 0 : index
    %c0_14 = arith.constant 0 : index
    %15 = vector.load %arg1[%c1_12, %c0_13, %c0_14] : memref<4x128x128xbf16, #tpu.memory_space<vmem>>, vector<1x128x128xbf16>
    %16 = vector.shape_cast %15 : vector<1x128x128xbf16> to vector<128x128xbf16>
    %cst_15 = arith.constant dense<0.000000e+00> : vector<16x128xf32>
    %17 = tpu.matmul %14, %16, %cst_15 {dimension_numbers = #tpu.dot_dimension_numbers<[1], [0], [0], [1], [0, 0, 1, 1], [], []>} : vector<16x128xbf16>, vector<128x128xbf16>, vector<16x128xf32> -> vector<16x128xf32>
    %c1_16 = arith.constant 1 : index
    %c0_17 = arith.constant 0 : index
    %c0_18 = arith.constant 0 : index
    %18 = vector.load %arg5[%c1_16, %c0_17, %c0_18] : memref<4x16x128xf32, #tpu.memory_space<vmem>>, vector<1x16x128xf32>
    %19 = vector.shape_cast %18 : vector<1x16x128xf32> to vector<16x128xf32>
    %20 = vector.shape_cast %17 : vector<16x128xf32> to vector<1x16x128xf32>
    tpu.vector_store %arg5[%c1_16, %c0_17, %c0_18], %20 {strides = array<i32>} : memref<4x16x128xf32, #tpu.memory_space<vmem>>, vector<1x16x128xf32>,
    %cst_19 = arith.constant dense<0.000000e+00> : vector<16xf32>
    %21 = vector.multi_reduction <add>, %17, %cst_19 [1] : vector<16x128xf32> to vector<16xf32>
    %22 = vector.shape_cast %21 : vector<16xf32> to vector<16x1xf32>
    %23 = arith.mulf %17, %17 : vector<16x128xf32>
    %cst_20 = arith.constant dense<0.000000e+00> : vector<16xf32>
    %24 = vector.multi_reduction <add>, %23, %cst_20 [1] : vector<16x128xf32> to vector<16xf32>
    %25 = vector.shape_cast %24 : vector<16xf32> to vector<16x1xf32>
    %26 = arith.addf %9, %22 : vector<16x1xf32>
    %27 = arith.addf %12, %25 : vector<16x1xf32>
    %c2 = arith.constant 2 : index
    %c0_21 = arith.constant 0 : index
    %c0_22 = arith.constant 0 : index
    %28 = vector.load %arg0[%c2, %c0_21, %c0_22] : memref<4x16x128xbf16, #tpu.memory_space<vmem>>, vector<1x16x128xbf16>
    %29 = vector.shape_cast %28 : vector<1x16x128xbf16> to vector<16x128xbf16>
    %c2_23 = arith.constant 2 : index
    %c0_24 = arith.constant 0 : index
    %c0_25 = arith.constant 0 : index
    %30 = vector.load %arg1[%c2_23, %c0_24, %c0_25] : memref<4x128x128xbf16, #tpu.memory_space<vmem>>, vector<1x128x128xbf16>
    %31 = vector.shape_cast %30 : vector<1x128x128xbf16> to vector<128x128xbf16>
    %cst_26 = arith.constant dense<0.000000e+00> : vector<16x128xf32>
    %32 = tpu.matmul %29, %31, %cst_26 {dimension_numbers = #tpu.dot_dimension_numbers<[1], [0], [0], [1], [0, 0, 1, 1], [], []>} : vector<16x128xbf16>, vector<128x128xbf16>, vector<16x128xf32> -> vector<16x128xf32>
    %c2_27 = arith.constant 2 : index
    %c0_28 = arith.constant 0 : index
    %c0_29 = arith.constant 0 : index
    %33 = vector.load %arg5[%c2_27, %c0_28, %c0_29] : memref<4x16x128xf32, #tpu.memory_space<vmem>>, vector<1x16x128xf32>
    %34 = vector.shape_cast %33 : vector<1x16x128xf32> to vector<16x128xf32>
    %35 = vector.shape_cast %32 : vector<16x128xf32> to vector<1x16x128xf32>
    tpu.vector_store %arg5[%c2_27, %c0_28, %c0_29], %35 {strides = array<i32>} : memref<4x16x128xf32, #tpu.memory_space<vmem>>, vector<1x16x128xf32>,
    %cst_30 = arith.constant dense<0.000000e+00> : vector<16xf32>
    %36 = vector.multi_reduction <add>, %32, %cst_30 [1] : vector<16x128xf32> to vector<16xf32>
    %37 = vector.shape_cast %36 : vector<16xf32> to vector<16x1xf32>
    %38 = arith.mulf %32, %32 : vector<16x128xf32>
    %cst_31 = arith.constant dense<0.000000e+00> : vector<16xf32>
    %39 = vector.multi_reduction <add>, %38, %cst_31 [1] : vector<16x128xf32> to vector<16xf32>
    %40 = vector.shape_cast %39 : vector<16xf32> to vector<16x1xf32>
    %41 = arith.addf %26, %37 : vector<16x1xf32>
    %42 = arith.addf %27, %40 : vector<16x1xf32>
    %c3 = arith.constant 3 : index
    %c0_32 = arith.constant 0 : index
    %c0_33 = arith.constant 0 : index
    %43 = vector.load %arg0[%c3, %c0_32, %c0_33] : memref<4x16x128xbf16, #tpu.memory_space<vmem>>, vector<1x16x128xbf16>
    %44 = vector.shape_cast %43 : vector<1x16x128xbf16> to vector<16x128xbf16>
    %c3_34 = arith.constant 3 : index
    %c0_35 = arith.constant 0 : index
    %c0_36 = arith.constant 0 : index
    %45 = vector.load %arg1[%c3_34, %c0_35, %c0_36] : memref<4x128x128xbf16, #tpu.memory_space<vmem>>, vector<1x128x128xbf16>
    %46 = vector.shape_cast %45 : vector<1x128x128xbf16> to vector<128x128xbf16>
    %cst_37 = arith.constant dense<0.000000e+00> : vector<16x128xf32>
    %47 = tpu.matmul %44, %46, %cst_37 {dimension_numbers = #tpu.dot_dimension_numbers<[1], [0], [0], [1], [0, 0, 1, 1], [], []>} : vector<16x128xbf16>, vector<128x128xbf16>, vector<16x128xf32> -> vector<16x128xf32>
    %c3_38 = arith.constant 3 : index
    %c0_39 = arith.constant 0 : index
    %c0_40 = arith.constant 0 : index
    %48 = vector.load %arg5[%c3_38, %c0_39, %c0_40] : memref<4x16x128xf32, #tpu.memory_space<vmem>>, vector<1x16x128xf32>
    %49 = vector.shape_cast %48 : vector<1x16x128xf32> to vector<16x128xf32>
    %50 = vector.shape_cast %47 : vector<16x128xf32> to vector<1x16x128xf32>
    tpu.vector_store %arg5[%c3_38, %c0_39, %c0_40], %50 {strides = array<i32>} : memref<4x16x128xf32, #tpu.memory_space<vmem>>, vector<1x16x128xf32>,
    %cst_41 = arith.constant dense<0.000000e+00> : vector<16xf32>
    %51 = vector.multi_reduction <add>, %47, %cst_41 [1] : vector<16x128xf32> to vector<16xf32>
    %52 = vector.shape_cast %51 : vector<16xf32> to vector<16x1xf32>
    %53 = arith.mulf %47, %47 : vector<16x128xf32>
    %cst_42 = arith.constant dense<0.000000e+00> : vector<16xf32>
    %54 = vector.multi_reduction <add>, %53, %cst_42 [1] : vector<16x128xf32> to vector<16xf32>
    %55 = vector.shape_cast %54 : vector<16xf32> to vector<16x1xf32>
    %56 = arith.addf %41, %52 : vector<16x1xf32>
    %57 = arith.addf %42, %55 : vector<16x1xf32>
    %cst_43 = arith.constant 0.00255102036 : f32
    %58 = vector.broadcast %cst_43 : f32 to vector<16x1xf32>
    %59 = arith.mulf %56, %58 : vector<16x1xf32>
    %cst_44 = arith.constant 0.00255102036 : f32
    %60 = vector.broadcast %cst_44 : f32 to vector<16x1xf32>
    %61 = arith.mulf %57, %60 : vector<16x1xf32>
    %62 = arith.mulf %59, %59 : vector<16x1xf32>
    %63 = arith.subf %61, %62 : vector<16x1xf32>
    %c0_45 = arith.constant 0 : index
    %c0_46 = arith.constant 0 : index
    %64 = vector.load %arg3[%c0_45, %c0_46] : memref<16x1xf32, #tpu.memory_space<vmem>>, vector<16x1xf32>
    %cst_47 = arith.constant 9.99999974E-6 : f32
    %65 = vector.broadcast %cst_47 : f32 to vector<16x1xf32>
    %66 = arith.addf %63, %65 : vector<16x1xf32>
    %67 = math.rsqrt %66 : vector<16x1xf32>
    %68 = arith.mulf %64, %67 : vector<16x1xf32>
    %c0_48 = arith.constant 0 : index
    %c0_49 = arith.constant 0 : index
    %69 = vector.load %arg4[%c0_48, %c0_49] : memref<16x1xf32, #tpu.memory_space<vmem>>, vector<16x1xf32>
    %70 = arith.mulf %59, %68 : vector<16x1xf32>
    %71 = arith.subf %69, %70 : vector<16x1xf32>
    %c0_50 = arith.constant 0 : index
    %c0_51 = arith.constant 0 : index
    %c0_52 = arith.constant 0 : index
    %72 = vector.load %arg5[%c0_50, %c0_51, %c0_52] : memref<4x16x128xf32, #tpu.memory_space<vmem>>, vector<1x16x128xf32>
    %73 = vector.shape_cast %72 : vector<1x16x128xf32> to vector<16x128xf32>
    %74 = vector.broadcast %68 : vector<16x1xf32> to vector<16x128xf32>
    %75 = arith.mulf %73, %74 : vector<16x128xf32>
    %76 = vector.broadcast %71 : vector<16x1xf32> to vector<16x128xf32>
    %77 = arith.addf %75, %76 : vector<16x128xf32>
    %cst_53 = arith.constant 0.000000e+00 : f32
    %78 = vector.broadcast %cst_53 : f32 to vector<16x128xf32>
    %79 = arith.maximumf %77, %78 : vector<16x128xf32>
    %c0_54 = arith.constant 0 : index
    %c0_55 = arith.constant 0 : index
    %c0_56 = arith.constant 0 : index
    %80 = vector.load %arg5[%c0_54, %c0_55, %c0_56] : memref<4x16x128xf32, #tpu.memory_space<vmem>>, vector<1x16x128xf32>
    %81 = vector.shape_cast %80 : vector<1x16x128xf32> to vector<16x128xf32>
    %82 = vector.shape_cast %79 : vector<16x128xf32> to vector<1x16x128xf32>
    tpu.vector_store %arg5[%c0_54, %c0_55, %c0_56], %82 {strides = array<i32>} : memref<4x16x128xf32, #tpu.memory_space<vmem>>, vector<1x16x128xf32>,
    %c1_57 = arith.constant 1 : index
    %c0_58 = arith.constant 0 : index
    %c0_59 = arith.constant 0 : index
    %83 = vector.load %arg5[%c1_57, %c0_58, %c0_59] : memref<4x16x128xf32, #tpu.memory_space<vmem>>, vector<1x16x128xf32>
    %84 = vector.shape_cast %83 : vector<1x16x128xf32> to vector<16x128xf32>
    %85 = vector.broadcast %68 : vector<16x1xf32> to vector<16x128xf32>
    %86 = arith.mulf %84, %85 : vector<16x128xf32>
    %87 = vector.broadcast %71 : vector<16x1xf32> to vector<16x128xf32>
    %88 = arith.addf %86, %87 : vector<16x128xf32>
    %cst_60 = arith.constant 0.000000e+00 : f32
    %89 = vector.broadcast %cst_60 : f32 to vector<16x128xf32>
    %90 = arith.maximumf %88, %89 : vector<16x128xf32>
    %c1_61 = arith.constant 1 : index
    %c0_62 = arith.constant 0 : index
    %c0_63 = arith.constant 0 : index
    %91 = vector.load %arg5[%c1_61, %c0_62, %c0_63] : memref<4x16x128xf32, #tpu.memory_space<vmem>>, vector<1x16x128xf32>
    %92 = vector.shape_cast %91 : vector<1x16x128xf32> to vector<16x128xf32>
    %93 = vector.shape_cast %90 : vector<16x128xf32> to vector<1x16x128xf32>
    tpu.vector_store %arg5[%c1_61, %c0_62, %c0_63], %93 {strides = array<i32>} : memref<4x16x128xf32, #tpu.memory_space<vmem>>, vector<1x16x128xf32>,
    %c2_64 = arith.constant 2 : index
    %c0_65 = arith.constant 0 : index
    %c0_66 = arith.constant 0 : index
    %94 = vector.load %arg5[%c2_64, %c0_65, %c0_66] : memref<4x16x128xf32, #tpu.memory_space<vmem>>, vector<1x16x128xf32>
    %95 = vector.shape_cast %94 : vector<1x16x128xf32> to vector<16x128xf32>
    %96 = vector.broadcast %68 : vector<16x1xf32> to vector<16x128xf32>
    %97 = arith.mulf %95, %96 : vector<16x128xf32>
    %98 = vector.broadcast %71 : vector<16x1xf32> to vector<16x128xf32>
    %99 = arith.addf %97, %98 : vector<16x128xf32>
    %cst_67 = arith.constant 0.000000e+00 : f32
    %100 = vector.broadcast %cst_67 : f32 to vector<16x128xf32>
    %101 = arith.maximumf %99, %100 : vector<16x128xf32>
    %c2_68 = arith.constant 2 : index
    %c0_69 = arith.constant 0 : index
    %c0_70 = arith.constant 0 : index
    %102 = vector.load %arg5[%c2_68, %c0_69, %c0_70] : memref<4x16x128xf32, #tpu.memory_space<vmem>>, vector<1x16x128xf32>
    %103 = vector.shape_cast %102 : vector<1x16x128xf32> to vector<16x128xf32>
    %104 = vector.shape_cast %101 : vector<16x128xf32> to vector<1x16x128xf32>
    tpu.vector_store %arg5[%c2_68, %c0_69, %c0_70], %104 {strides = array<i32>} : memref<4x16x128xf32, #tpu.memory_space<vmem>>, vector<1x16x128xf32>,
    %c3_71 = arith.constant 3 : index
    %c0_72 = arith.constant 0 : index
    %c0_73 = arith.constant 0 : index
    %105 = vector.load %arg5[%c3_71, %c0_72, %c0_73] : memref<4x16x128xf32, #tpu.memory_space<vmem>>, vector<1x16x128xf32>
    %106 = vector.shape_cast %105 : vector<1x16x128xf32> to vector<16x128xf32>
    %107 = vector.broadcast %68 : vector<16x1xf32> to vector<16x128xf32>
    %108 = arith.mulf %106, %107 : vector<16x128xf32>
    %109 = vector.broadcast %71 : vector<16x1xf32> to vector<16x128xf32>
    %110 = arith.addf %108, %109 : vector<16x128xf32>
    %cst_74 = arith.constant 0.000000e+00 : f32
    %111 = vector.broadcast %cst_74 : f32 to vector<16x128xf32>
    %112 = arith.maximumf %110, %111 : vector<16x128xf32>
    %c3_75 = arith.constant 3 : index
    %c0_76 = arith.constant 0 : index
    %c0_77 = arith.constant 0 : index
    %113 = vector.load %arg5[%c3_75, %c0_76, %c0_77] : memref<4x16x128xf32, #tpu.memory_space<vmem>>, vector<1x16x128xf32>
    %114 = vector.shape_cast %113 : vector<1x16x128xf32> to vector<16x128xf32>
    %115 = vector.shape_cast %112 : vector<16x128xf32> to vector<1x16x128xf32>
    tpu.vector_store %arg5[%c3_75, %c0_76, %c0_77], %115 {strides = array<i32>} : memref<4x16x128xf32, #tpu.memory_space<vmem>>, vector<1x16x128xf32>,
    return
  }
}

module attributes {stable_mosaic.version = 11 : i64} {
  func.func @_convt_layer_kernel(%arg0: memref<4x8x64xbf16, #tpu.memory_space<vmem>>, %arg1: memref<4x64x512xbf16, #tpu.memory_space<vmem>>, %arg2: memref<8x1xf32, #tpu.memory_space<vmem>>, %arg3: memref<8x1xf32, #tpu.memory_space<vmem>>, %arg4: memref<8x1xf32, #tpu.memory_space<vmem>>, %arg5: memref<4x8x512xf32, #tpu.memory_space<vmem>>) attributes {dimension_semantics = [], scalar_prefetch = 0 : i64, scratch_operands = 0 : i64, tpu.core_type = #tpu.core_type<tc>} {
    %c0 = arith.constant 0 : index
    %c0_0 = arith.constant 0 : index
    %c0_1 = arith.constant 0 : index
    %0 = vector.load %arg0[%c0, %c0_0, %c0_1] : memref<4x8x64xbf16, #tpu.memory_space<vmem>>, vector<1x8x64xbf16>
    %1 = vector.shape_cast %0 : vector<1x8x64xbf16> to vector<8x64xbf16>
    %c0_2 = arith.constant 0 : index
    %c0_3 = arith.constant 0 : index
    %c0_4 = arith.constant 0 : index
    %2 = vector.load %arg1[%c0_2, %c0_3, %c0_4] : memref<4x64x512xbf16, #tpu.memory_space<vmem>>, vector<1x64x512xbf16>
    %3 = vector.shape_cast %2 : vector<1x64x512xbf16> to vector<64x512xbf16>
    %cst = arith.constant dense<0.000000e+00> : vector<8x512xf32>
    %4 = tpu.matmul %1, %3, %cst {dimension_numbers = #tpu.dot_dimension_numbers<[1], [0], [0], [1], [0, 0, 1, 1], [], []>} : vector<8x64xbf16>, vector<64x512xbf16>, vector<8x512xf32> -> vector<8x512xf32>
    %c0_5 = arith.constant 0 : index
    %c0_6 = arith.constant 0 : index
    %5 = vector.load %arg2[%c0_5, %c0_6] : memref<8x1xf32, #tpu.memory_space<vmem>>, vector<8x1xf32>
    %6 = vector.broadcast %5 : vector<8x1xf32> to vector<8x512xf32>
    %7 = arith.addf %4, %6 : vector<8x512xf32>
    %8 = math.tanh %7 : vector<8x512xf32>
    %c0_7 = arith.constant 0 : index
    %c0_8 = arith.constant 0 : index
    %c0_9 = arith.constant 0 : index
    %9 = vector.load %arg5[%c0_7, %c0_8, %c0_9] : memref<4x8x512xf32, #tpu.memory_space<vmem>>, vector<1x8x512xf32>
    %10 = vector.shape_cast %9 : vector<1x8x512xf32> to vector<8x512xf32>
    %11 = vector.shape_cast %8 : vector<8x512xf32> to vector<1x8x512xf32>
    tpu.vector_store %arg5[%c0_7, %c0_8, %c0_9], %11 {strides = array<i32>} : memref<4x8x512xf32, #tpu.memory_space<vmem>>, vector<1x8x512xf32>,
    %c1 = arith.constant 1 : index
    %c0_10 = arith.constant 0 : index
    %c0_11 = arith.constant 0 : index
    %12 = vector.load %arg0[%c1, %c0_10, %c0_11] : memref<4x8x64xbf16, #tpu.memory_space<vmem>>, vector<1x8x64xbf16>
    %13 = vector.shape_cast %12 : vector<1x8x64xbf16> to vector<8x64xbf16>
    %c1_12 = arith.constant 1 : index
    %c0_13 = arith.constant 0 : index
    %c0_14 = arith.constant 0 : index
    %14 = vector.load %arg1[%c1_12, %c0_13, %c0_14] : memref<4x64x512xbf16, #tpu.memory_space<vmem>>, vector<1x64x512xbf16>
    %15 = vector.shape_cast %14 : vector<1x64x512xbf16> to vector<64x512xbf16>
    %cst_15 = arith.constant dense<0.000000e+00> : vector<8x512xf32>
    %16 = tpu.matmul %13, %15, %cst_15 {dimension_numbers = #tpu.dot_dimension_numbers<[1], [0], [0], [1], [0, 0, 1, 1], [], []>} : vector<8x64xbf16>, vector<64x512xbf16>, vector<8x512xf32> -> vector<8x512xf32>
    %c0_16 = arith.constant 0 : index
    %c0_17 = arith.constant 0 : index
    %17 = vector.load %arg2[%c0_16, %c0_17] : memref<8x1xf32, #tpu.memory_space<vmem>>, vector<8x1xf32>
    %18 = vector.broadcast %17 : vector<8x1xf32> to vector<8x512xf32>
    %19 = arith.addf %16, %18 : vector<8x512xf32>
    %20 = math.tanh %19 : vector<8x512xf32>
    %c1_18 = arith.constant 1 : index
    %c0_19 = arith.constant 0 : index
    %c0_20 = arith.constant 0 : index
    %21 = vector.load %arg5[%c1_18, %c0_19, %c0_20] : memref<4x8x512xf32, #tpu.memory_space<vmem>>, vector<1x8x512xf32>
    %22 = vector.shape_cast %21 : vector<1x8x512xf32> to vector<8x512xf32>
    %23 = vector.shape_cast %20 : vector<8x512xf32> to vector<1x8x512xf32>
    tpu.vector_store %arg5[%c1_18, %c0_19, %c0_20], %23 {strides = array<i32>} : memref<4x8x512xf32, #tpu.memory_space<vmem>>, vector<1x8x512xf32>,
    %c2 = arith.constant 2 : index
    %c0_21 = arith.constant 0 : index
    %c0_22 = arith.constant 0 : index
    %24 = vector.load %arg0[%c2, %c0_21, %c0_22] : memref<4x8x64xbf16, #tpu.memory_space<vmem>>, vector<1x8x64xbf16>
    %25 = vector.shape_cast %24 : vector<1x8x64xbf16> to vector<8x64xbf16>
    %c2_23 = arith.constant 2 : index
    %c0_24 = arith.constant 0 : index
    %c0_25 = arith.constant 0 : index
    %26 = vector.load %arg1[%c2_23, %c0_24, %c0_25] : memref<4x64x512xbf16, #tpu.memory_space<vmem>>, vector<1x64x512xbf16>
    %27 = vector.shape_cast %26 : vector<1x64x512xbf16> to vector<64x512xbf16>
    %cst_26 = arith.constant dense<0.000000e+00> : vector<8x512xf32>
    %28 = tpu.matmul %25, %27, %cst_26 {dimension_numbers = #tpu.dot_dimension_numbers<[1], [0], [0], [1], [0, 0, 1, 1], [], []>} : vector<8x64xbf16>, vector<64x512xbf16>, vector<8x512xf32> -> vector<8x512xf32>
    %c0_27 = arith.constant 0 : index
    %c0_28 = arith.constant 0 : index
    %29 = vector.load %arg2[%c0_27, %c0_28] : memref<8x1xf32, #tpu.memory_space<vmem>>, vector<8x1xf32>
    %30 = vector.broadcast %29 : vector<8x1xf32> to vector<8x512xf32>
    %31 = arith.addf %28, %30 : vector<8x512xf32>
    %32 = math.tanh %31 : vector<8x512xf32>
    %c2_29 = arith.constant 2 : index
    %c0_30 = arith.constant 0 : index
    %c0_31 = arith.constant 0 : index
    %33 = vector.load %arg5[%c2_29, %c0_30, %c0_31] : memref<4x8x512xf32, #tpu.memory_space<vmem>>, vector<1x8x512xf32>
    %34 = vector.shape_cast %33 : vector<1x8x512xf32> to vector<8x512xf32>
    %35 = vector.shape_cast %32 : vector<8x512xf32> to vector<1x8x512xf32>
    tpu.vector_store %arg5[%c2_29, %c0_30, %c0_31], %35 {strides = array<i32>} : memref<4x8x512xf32, #tpu.memory_space<vmem>>, vector<1x8x512xf32>,
    %c3 = arith.constant 3 : index
    %c0_32 = arith.constant 0 : index
    %c0_33 = arith.constant 0 : index
    %36 = vector.load %arg0[%c3, %c0_32, %c0_33] : memref<4x8x64xbf16, #tpu.memory_space<vmem>>, vector<1x8x64xbf16>
    %37 = vector.shape_cast %36 : vector<1x8x64xbf16> to vector<8x64xbf16>
    %c3_34 = arith.constant 3 : index
    %c0_35 = arith.constant 0 : index
    %c0_36 = arith.constant 0 : index
    %38 = vector.load %arg1[%c3_34, %c0_35, %c0_36] : memref<4x64x512xbf16, #tpu.memory_space<vmem>>, vector<1x64x512xbf16>
    %39 = vector.shape_cast %38 : vector<1x64x512xbf16> to vector<64x512xbf16>
    %cst_37 = arith.constant dense<0.000000e+00> : vector<8x512xf32>
    %40 = tpu.matmul %37, %39, %cst_37 {dimension_numbers = #tpu.dot_dimension_numbers<[1], [0], [0], [1], [0, 0, 1, 1], [], []>} : vector<8x64xbf16>, vector<64x512xbf16>, vector<8x512xf32> -> vector<8x512xf32>
    %c0_38 = arith.constant 0 : index
    %c0_39 = arith.constant 0 : index
    %41 = vector.load %arg2[%c0_38, %c0_39] : memref<8x1xf32, #tpu.memory_space<vmem>>, vector<8x1xf32>
    %42 = vector.broadcast %41 : vector<8x1xf32> to vector<8x512xf32>
    %43 = arith.addf %40, %42 : vector<8x512xf32>
    %44 = math.tanh %43 : vector<8x512xf32>
    %c3_40 = arith.constant 3 : index
    %c0_41 = arith.constant 0 : index
    %c0_42 = arith.constant 0 : index
    %45 = vector.load %arg5[%c3_40, %c0_41, %c0_42] : memref<4x8x512xf32, #tpu.memory_space<vmem>>, vector<1x8x512xf32>
    %46 = vector.shape_cast %45 : vector<1x8x512xf32> to vector<8x512xf32>
    %47 = vector.shape_cast %44 : vector<8x512xf32> to vector<1x8x512xf32>
    tpu.vector_store %arg5[%c3_40, %c0_41, %c0_42], %47 {strides = array<i32>} : memref<4x8x512xf32, #tpu.memory_space<vmem>>, vector<1x8x512xf32>,
    return
  }
}

</mosaic_0001>

<llo_original>
// kernel: tile.9
$region0: #{tile.9}
  %s0 = inlined_call_operand.vmem [shape: f32[16,64], index: 0, kind: input, shape index: {}]
  %s1 = inlined_call_operand.vmem [shape: f32[1,1024], index: 1, kind: output, shape index: {}]
  $region1: #{tile.9} parent=0
    #allocation0 [shape = 'u8[32768]{0}', space=vmem, size = 0x8000, scoped, tag = 'scoped mem for output reshape']
    %v2 = vld [vmem:[%s0] ss:$2 sm:$0xff]
    %vm3 = vcmask 523264
    %4 = vst.msk [vmem:[#allocation0] ss:$8 sm:$0xf] %vm3, %v2
    %5 = vst.msk [vmem:[#allocation0] ss:$8 sm:$0xf0] %vm3, %v2
    %s6 = scalar_lea.vmem %s0, 1
    %v7 = vld [vmem:[%s6] ss:$2 sm:$0xff]
    %8 = vrot.lane.b32.xlu0 %v7, 64
    %v9 = vpop.permute.xlu0 %8
    %vm10 = vcmask 1048064
    %11 = vst.msk [vmem:[#allocation0] ss:$8 sm:$0xf] %vm10, %v9
    %12 = vst.msk [vmem:[#allocation0] ss:$8 sm:$0xf0] %vm10, %v9
    %s14 = sshll.u32 1, 1
    %s15 = ssub.s32 %s14, 1
    %v17 = vld [vmem:[#allocation0] sm:%s15]
    %s18 = sshll.u32 1, 1
    %s19 = ssub.s32 %s18, 1
    %20 = vst [vmem:[%s1] sm:%s19] %v17
    %s21 = scalar_lea.vmem [#allocation0], 8
    %v22 = vld [vmem:[%s21] sm:%s15]
    %s23 = sshll.u32 1, 1
    %s24 = ssub.s32 %s23, 1
    %s25 = scalar_lea.vmem %s1, 1
    %26 = vst [vmem:[%s25] sm:%s24] %v22
    %s27 = scalar_lea.vmem [#allocation0], 16
    %v28 = vld [vmem:[%s27] sm:%s15]
    %s29 = sshll.u32 1, 1
    %s30 = ssub.s32 %s29, 1
    %s31 = smul.addr 1, 2
    %s32 = scalar_lea.vmem %s1, %s31
    %33 = vst [vmem:[%s32] sm:%s30] %v28
    %s34 = scalar_lea.vmem [#allocation0], 24
    %v35 = vld [vmem:[%s34] sm:%s15]
    %s36 = sshll.u32 1, 1
    %s37 = ssub.s32 %s36, 1
    %s38 = smul.addr 1, 3
    %s39 = scalar_lea.vmem %s1, %s38
    %40 = vst [vmem:[%s39] sm:%s37] %v35
    %s41 = scalar_lea.vmem [#allocation0], 32
    %v42 = vld [vmem:[%s41] sm:%s15]
    %s43 = sshll.u32 1, 1
    %s44 = ssub.s32 %s43, 1
    %s45 = smul.addr 1, 4
    %s46 = scalar_lea.vmem %s1, %s45
    %47 = vst [vmem:[%s46] sm:%s44] %v42
    %s48 = scalar_lea.vmem [#allocation0], 40
    %v49 = vld [vmem:[%s48] sm:%s15]
    %s50 = sshll.u32 1, 1
    %s51 = ssub.s32 %s50, 1
    %s52 = smul.addr 1, 5
    %s53 = scalar_lea.vmem %s1, %s52
    %54 = vst [vmem:[%s53] sm:%s51] %v49
    %s55 = scalar_lea.vmem [#allocation0], 48
    %v56 = vld [vmem:[%s55] sm:%s15]
    %s57 = sshll.u32 1, 1
    %s58 = ssub.s32 %s57, 1
    %s59 = smul.addr 1, 6
    %s60 = scalar_lea.vmem %s1, %s59
    %61 = vst [vmem:[%s60] sm:%s58] %v56
    %s62 = scalar_lea.vmem [#allocation0], 56
    %v63 = vld [vmem:[%s62] sm:%s15]
    %s64 = sshll.u32 1, 1
    %s65 = ssub.s32 %s64, 1
    %s66 = smul.addr 1, 7
    %s67 = scalar_lea.vmem %s1, %s66
    %68 = vst [vmem:[%s67] sm:%s65] %v63

// kernel: tile.8
$region0: #{tile.8}
  #allocation0 [shape = 's32[1]{0}', space=sflag, size = 0x4, scoped, tag = 'scoped memory for tile.8']
  %s0 = inlined_call_operand.vmem [shape: f32[64], index: 0, kind: input, shape index: {}]
  %s1 = inlined_call_operand.vmem [shape: f32[16,64], index: 1, kind: output, shape index: {}]
  // Predicated region
  $region2: #{tile.8} parent=0 // pred_check
    _
  $region3: #{tile.8} parent=0 // pred_check_branch
    %3 = sbr.rel (0) target = $region5
  $region4: #{tile.8} parent=0 // pred_region
    _
  $region5: #{tile.8} parent=0 // pred_fallthru
    _
  %v4 = vld [vmem:[%s0] ss:$0 sm:$0xff]
  %5 = vst [vmem:[%s1] sm:$0xff] %v4
  %s6 = scalar_lea.vmem %s1, 8
  %7 = vst [vmem:[%s6] sm:$0xff] %v4

// kernel: generator_forward.4
$region0: #{generator_forward.4}
  #allocation0 [shape = 'u32[]', space=smem, size = 0x4, offset = 0x4, fixed_abs, tag = 'smem constant byte address 0x4 - core index']
  #allocation1 [shape = 'u32[144,128]{1,0:T(1,128)}', space=vmem, size = 0x12000, scoped, tag = 'internal scratch']
  %s0 = inlined_call_operand.vmem [shape: bf16[8,32], index: 0, kind: input, shape index: {}]
  %s1 = inlined_call_operand.vmem [shape: bf16[32,1024], index: 1, kind: input, shape index: {}]
  %s2 = inlined_call_operand.vmem [shape: f32[1,1024], index: 2, kind: input, shape index: {}]
  %s3 = inlined_call_operand.vmem [shape: f32[8,1024], index: 3, kind: output, shape index: {}]
  %s4 = sld [smem:[#allocation0]]
  $region22: #{generator_forward.4} parent=0
    _
  %s6 = ssub.s32 1, %s4
  %s7 = scalar_select 0, %s6, %s4
  // Predicated region
  $region2: #{generator_forward.4} parent=0 // pred_check
    _
  $region3: #{generator_forward.4} parent=0 // pred_check_branch
    %9 = sbr.rel (0) target = $region5
  $region4: #{generator_forward.4} parent=0 // pred_region
    _
  $region5: #{generator_forward.4} parent=0 // pred_fallthru
    _
  // Predicated region
  $region6: #{generator_forward.4} parent=0 // pred_check
    _
  $region7: #{generator_forward.4} parent=0 // pred_check_branch
    %11 = sbr.rel (0) target = $region9
  $region8: #{generator_forward.4} parent=0 // pred_region
    _
  $region9: #{generator_forward.4} parent=0 // pred_fallthru
    _
  // Predicated region
  $region10: #{generator_forward.4} parent=0 // pred_check
    _
  $region11: #{generator_forward.4} parent=0 // pred_check_branch
    %13 = sbr.rel (0) target = $region13
  $region12: #{generator_forward.4} parent=0 // pred_region
    _
  $region13: #{generator_forward.4} parent=0 // pred_fallthru
    _
  %v15 = vld [vmem:[%s0] sm:$0xf]
  %v16 = vld [vmem:[%s1] sm:$0xff]
  %v17 = vld [vmem:[%s1 + $0x8] sm:$0xff]
  %v18 = vld [vmem:[%s1 + $0x10] sm:$0xff]
  %v19 = vld [vmem:[%s1 + $0x18] sm:$0xff]
  %v20 = vld [vmem:[%s1 + $0x20] sm:$0xff]
  %v21 = vld [vmem:[%s1 + $0x28] sm:$0xff]
  %v22 = vld [vmem:[%s1 + $0x30] sm:$0xff]
  %v23 = vld [vmem:[%s1 + $0x38] sm:$0xff]
  %v24 = vld [vmem:[%s1 + $0x40] sm:$0xff]
  %v25 = vld [vmem:[%s1 + $0x48] sm:$0xff]
  %v26 = vld [vmem:[%s1 + $0x50] sm:$0xff]
  %v27 = vld [vmem:[%s1 + $0x58] sm:$0xff]
  %v28 = vld [vmem:[%s1 + $0x60] sm:$0xff]
  %v29 = vld [vmem:[%s1 + $0x68] sm:$0xff]
  %v30 = vld [vmem:[%s1 + $0x70] sm:$0xff]
  %v31 = vld [vmem:[%s1 + $0x78] sm:$0xff]
  %v32 = vld [vmem:[%s2] sm:$0xff]
  %v34 = vlaneseq
  %v35 = vshrl.u32 %v34, 7
  %v36 = vsub.s32 0, %v35
  %v37 = vrot.slane %v32, %v36
  %v38 = vlaneseq
  %v39 = vshrl.u32 %v38, 7
  %v40 = vsub.s32 1, %v39
  %v41 = vrot.slane %v32, %v40
  %v42 = vlaneseq
  %v43 = vshrl.u32 %v42, 7
  %v44 = vsub.s32 2, %v43
  %v45 = vrot.slane %v32, %v44
  %v46 = vlaneseq
  %v47 = vshrl.u32 %v46, 7
  %v48 = vsub.s32 3, %v47
  %v49 = vrot.slane %v32, %v48
  %v50 = vlaneseq
  %v51 = vshrl.u32 %v50, 7
  %v52 = vsub.s32 4, %v51
  %v53 = vrot.slane %v32, %v52
  %v54 = vlaneseq
  %v55 = vshrl.u32 %v54, 7
  %v56 = vsub.s32 5, %v55
  %v57 = vrot.slane %v32, %v56
  %v58 = vlaneseq
  %v59 = vshrl.u32 %v58, 7
  %v60 = vsub.s32 6, %v59
  %v61 = vrot.slane %v32, %v60
  %v62 = vlaneseq
  %v63 = vshrl.u32 %v62, 7
  %v64 = vsub.s32 7, %v63
  %v65 = vrot.slane %v32, %v64
  %v90 = vunpack.c.l.b16 %v16
  %v91 = vunpack.c.h.b16 %v16
  %v92 = vunpack.c.l.b16 %v17
  %v93 = vunpack.c.h.b16 %v17
  %v94 = vunpack.c.l.b16 %v18
  %v95 = vunpack.c.h.b16 %v18
  %v96 = vunpack.c.l.b16 %v19
  %v97 = vunpack.c.h.b16 %v19
  %v98 = vunpack.c.l.b16 %v20
  %v99 = vunpack.c.h.b16 %v20
  %v100 = vunpack.c.l.b16 %v21
  %v101 = vunpack.c.h.b16 %v21
  %v102 = vunpack.c.l.b16 %v22
  %v103 = vunpack.c.h.b16 %v22
  %v104 = vunpack.c.l.b16 %v23
  %v105 = vunpack.c.h.b16 %v23
  %v106 = vunpack.c.l.b16 %v24
  %v107 = vunpack.c.h.b16 %v24
  %v108 = vunpack.c.l.b16 %v25
  %v109 = vunpack.c.h.b16 %v25
  %v110 = vunpack.c.l.b16 %v26
  %v111 = vunpack.c.h.b16 %v26
  %v112 = vunpack.c.l.b16 %v27
  %v113 = vunpack.c.h.b16 %v27
  %v114 = vunpack.c.l.b16 %v28
  %v115 = vunpack.c.h.b16 %v28
  %v116 = vunpack.c.l.b16 %v29
  %v117 = vunpack.c.h.b16 %v29
  %v118 = vunpack.c.l.b16 %v30
  %v119 = vunpack.c.h.b16 %v30
  %v120 = vunpack.c.l.b16 %v31
  %v121 = vunpack.c.h.b16 %v31
  %v122 = vpack.c.b16 %v98, %v90
  %v123 = vpack.c.b16 %v99, %v91
  %v124 = vpack.c.b16 %v100, %v92
  %v125 = vpack.c.b16 %v101, %v93
  %v126 = vpack.c.b16 %v102, %v94
  %v127 = vpack.c.b16 %v103, %v95
  %v128 = vpack.c.b16 %v104, %v96
  %v129 = vpack.c.b16 %v105, %v97
  %v130 = vpack.c.b16 %v114, %v106
  %v131 = vpack.c.b16 %v115, %v107
  %v132 = vpack.c.b16 %v116, %v108
  %v133 = vpack.c.b16 %v117, %v109
  %v134 = vpack.c.b16 %v118, %v110
  %v135 = vpack.c.b16 %v119, %v111
  %v136 = vpack.c.b16 %v120, %v112
  %v137 = vpack.c.b16 %v121, %v113
  %vm154 = vcmask 261120
  %v156 = vsel %vm154, %v15, 0
  %158 = vmatprep.subr.bf16.mxu0 0
  %159 = vmatpush1.bf16.msra.mxu0 0
  %160 = vmatprep.subr.bf16.mxu0 0
  %161 = vmatpush1.bf16.msra.mxu0 0
  %162 = vmatprep.subr.bf16.mxu0 0
  %163 = vmatpush1.bf16.msra.mxu0 0
  %164 = vmatprep.subr.bf16.mxu0 0
  %165 = vmatpush1.bf16.msra.mxu0 0
  %166 = vmatprep.subr.bf16.mxu0 0
  %167 = vmatpush1.bf16.msra.mxu0 0
  %168 = vmatprep.subr.bf16.mxu0 0
  %169 = vmatpush1.bf16.msra.mxu0 0
  %170 = vmatprep.subr.bf16.mxu0 %v131
  %171 = vmatpush1.bf16.msra.mxu0 %v130
  %172 = vmatprep.subr.bf16.mxu0 %v123
  %173 = vmatpush1.bf16.msra.mxu0 %v122
  %174 = vmatprep.subr.bf16.mxu0 0
  %175 = vmatpush2.bf16.msra.mxu0 0
  %176 = vmatprep.subr.bf16.mxu0 0
  %177 = vmatpush2.bf16.msra.mxu0 0
  %178 = vmatprep.subr.bf16.mxu0 0
  %179 = vmatpush2.bf16.msra.mxu0 0
  %180 = vmatprep.subr.bf16.mxu0 0
  %181 = vmatpush2.bf16.msra.mxu0 0
  %182 = vmatprep.subr.bf16.mxu0 0
  %183 = vmatpush2.bf16.msra.mxu0 0
  %184 = vmatprep.subr.bf16.mxu0 0
  %185 = vmatpush2.bf16.msra.mxu0 0
  %186 = vmatprep.subr.bf16.mxu0 0
  %187 = vmatpush2.bf16.msra.mxu0 0
  %188 = vmatprep.subr.bf16.mxu0 0
  %189 = vmatpush2.bf16.msra.mxu0 0
  %190 = vmatprep.mubr.bf16.mxu0 0
  %191 = vmatmul.mubr.bf16.gmra.mxu0 %v156
  %v192 = vpop.f32.mrf.mxu0
  %v193 = vadd.f32 %v37, %v192
  %v194 = vpop.f32.mrf.mxu0
  %v195 = vadd.f32 %v41, %v194
  %v196 = vpop.f32.mrf.mxu0
  %v197 = vpop.f32.mrf.mxu0
  %198 = vdwg.mxu0
  %199 = vmatprep.subr.bf16.mxu0 0
  %200 = vmatpush1.bf16.msra.mxu0 0
  %201 = vmatprep.subr.bf16.mxu0 0
  %202 = vmatpush1.bf16.msra.mxu0 0
  %203 = vmatprep.subr.bf16.mxu0 0
  %204 = vmatpush1.bf16.msra.mxu0 0
  %205 = vmatprep.subr.bf16.mxu0 0
  %206 = vmatpush1.bf16.msra.mxu0 0
  %207 = vmatprep.subr.bf16.mxu0 0
  %208 = vmatpush1.bf16.msra.mxu0 0
  %209 = vmatprep.subr.bf16.mxu0 0
  %210 = vmatpush1.bf16.msra.mxu0 0
  %211 = vmatprep.subr.bf16.mxu0 %v133
  %212 = vmatpush1.bf16.msra.mxu0 %v132
  %213 = vmatprep.subr.bf16.mxu0 %v125
  %214 = vmatpush1.bf16.msra.mxu0 %v124
  %215 = vmatprep.subr.bf16.mxu0 0
  %216 = vmatpush2.bf16.msra.mxu0 0
  %217 = vmatprep.subr.bf16.mxu0 0
  %218 = vmatpush2.bf16.msra.mxu0 0
  %219 = vmatprep.subr.bf16.mxu0 0
  %220 = vmatpush2.bf16.msra.mxu0 0
  %221 = vmatprep.subr.bf16.mxu0 0
  %222 = vmatpush2.bf16.msra.mxu0 0
  %223 = vmatprep.subr.bf16.mxu0 0
  %224 = vmatpush2.bf16.msra.mxu0 0
  %225 = vmatprep.subr.bf16.mxu0 0
  %226 = vmatpush2.bf16.msra.mxu0 0
  %227 = vmatprep.subr.bf16.mxu0 0
  %228 = vmatpush2.bf16.msra.mxu0 0
  %229 = vmatprep.subr.bf16.mxu0 0
  %230 = vmatpush2.bf16.msra.mxu0 0
  %231 = vmatprep.mubr.bf16.mxu0 0
  %232 = vmatmul.mubr.bf16.gmra.mxu0 %v156
  %v233 = vpop.f32.mrf.mxu0
  %v234 = vadd.f32 %v45, %v233
  %v235 = vpop.f32.mrf.mxu0
  %v236 = vadd.f32 %v49, %v235
  %v237 = vpop.f32.mrf.mxu0
  %v238 = vpop.f32.mrf.mxu0
  %239 = vdwg.mxu0
  %240 = vmatprep.subr.bf16.mxu0 0
  %241 = vmatpush1.bf16.msra.mxu0 0
  %242 = vmatprep.subr.bf16.mxu0 0
  %243 = vmatpush1.bf16.msra.mxu0 0
  %244 = vmatprep.subr.bf16.mxu0 0
  %245 = vmatpush1.bf16.msra.mxu0 0
  %246 = vmatprep.subr.bf16.mxu0 0
  %247 = vmatpush1.bf16.msra.mxu0 0
  %248 = vmatprep.subr.bf16.mxu0 0
  %249 = vmatpush1.bf16.msra.mxu0 0
  %250 = vmatprep.subr.bf16.mxu0 0
  %251 = vmatpush1.bf16.msra.mxu0 0
  %252 = vmatprep.subr.bf16.mxu0 %v135
  %253 = vmatpush1.bf16.msra.mxu0 %v134
  %254 = vmatprep.subr.bf16.mxu0 %v127
  %255 = vmatpush1.bf16.msra.mxu0 %v126
  %256 = vmatprep.subr.bf16.mxu0 0
  %257 = vmatpush2.bf16.msra.mxu0 0
  %258 = vmatprep.subr.bf16.mxu0 0
  %259 = vmatpush2.bf16.msra.mxu0 0
  %260 = vmatprep.subr.bf16.mxu0 0
  %261 = vmatpush2.bf16.msra.mxu0 0
  %262 = vmatprep.subr.bf16.mxu0 0
  %263 = vmatpush2.bf16.msra.mxu0 0
  %264 = vmatprep.subr.bf16.mxu0 0
  %265 = vmatpush2.bf16.msra.mxu0 0
  %266 = vmatprep.subr.bf16.mxu0 0
  %267 = vmatpush2.bf16.msra.mxu0 0
  %268 = vmatprep.subr.bf16.mxu0 0
  %269 = vmatpush2.bf16.msra.mxu0 0
  %270 = vmatprep.subr.bf16.mxu0 0
  %271 = vmatpush2.bf16.msra.mxu0 0
  %272 = vmatprep.mubr.bf16.mxu0 0
  %273 = vmatmul.mubr.bf16.gmra.mxu0 %v156
  %v274 = vpop.f32.mrf.mxu0
  %v275 = vadd.f32 %v53, %v274
  %v276 = vpop.f32.mrf.mxu0
  %v277 = vadd.f32 %v57, %v276
  %v278 = vpop.f32.mrf.mxu0
  %v279 = vpop.f32.mrf.mxu0
  %280 = vdwg.mxu0
  %281 = vmatprep.subr.bf16.mxu0 0
  %282 = vmatpush1.bf16.msra.mxu0 0
  %283 = vmatprep.subr.bf16.mxu0 0
  %284 = vmatpush1.bf16.msra.mxu0 0
  %285 = vmatprep.subr.bf16.mxu0 0
  %286 = vmatpush1.bf16.msra.mxu0 0
  %287 = vmatprep.subr.bf16.mxu0 0
  %288 = vmatpush1.bf16.msra.mxu0 0
  %289 = vmatprep.subr.bf16.mxu0 0
  %290 = vmatpush1.bf16.msra.mxu0 0
  %291 = vmatprep.subr.bf16.mxu0 0
  %292 = vmatpush1.bf16.msra.mxu0 0
  %293 = vmatprep.subr.bf16.mxu0 %v137
  %294 = vmatpush1.bf16.msra.mxu0 %v136
  %295 = vmatprep.subr.bf16.mxu0 %v129
  %296 = vmatpush1.bf16.msra.mxu0 %v128
  %297 = vmatprep.subr.bf16.mxu0 0
  %298 = vmatpush2.bf16.msra.mxu0 0
  %299 = vmatprep.subr.bf16.mxu0 0
  %300 = vmatpush2.bf16.msra.mxu0 0
  %301 = vmatprep.subr.bf16.mxu0 0
  %302 = vmatpush2.bf16.msra.mxu0 0
  %303 = vmatprep.subr.bf16.mxu0 0
  %304 = vmatpush2.bf16.msra.mxu0 0
  %305 = vmatprep.subr.bf16.mxu0 0
  %306 = vmatpush2.bf16.msra.mxu0 0
  %307 = vmatprep.subr.bf16.mxu0 0
  %308 = vmatpush2.bf16.msra.mxu0 0
  %309 = vmatprep.subr.bf16.mxu0 0
  %310 = vmatpush2.bf16.msra.mxu0 0
  %311 = vmatprep.subr.bf16.mxu0 0
  %312 = vmatpush2.bf16.msra.mxu0 0
  %313 = vmatprep.mubr.bf16.mxu0 0
  %314 = vmatmul.mubr.bf16.gmra.mxu0 %v156
  %v315 = vpop.f32.mrf.mxu0
  %v316 = vadd.f32 %v61, %v315
  %v317 = vpop.f32.mrf.mxu0
  %v318 = vadd.f32 %v65, %v317
  %v319 = vpop.f32.mrf.mxu0
  %v320 = vpop.f32.mrf.mxu0
  %321 = vdwg.mxu0
  %v322 = vmax.f32 %v193, 0.0
  %v323 = vmax.f32 %v195, 0.0
  %v324 = vmax.f32 %v234, 0.0
  %v325 = vmax.f32 %v236, 0.0
  %v326 = vmax.f32 %v275, 0.0
  %v327 = vmax.f32 %v277, 0.0
  %v328 = vmax.f32 %v316, 0.0
  %v329 = vmax.f32 %v318, 0.0
  %330 = vst [vmem:[%s3] sm:$0xff] %v322
  %331 = vst [vmem:[%s3 + $0x8] sm:$0xff] %v323
  %332 = vst [vmem:[%s3 + $0x10] sm:$0xff] %v324
  %333 = vst [vmem:[%s3 + $0x18] sm:$0xff] %v325
  %334 = vst [vmem:[%s3 + $0x20] sm:$0xff] %v326
  %335 = vst [vmem:[%s3 + $0x28] sm:$0xff] %v327
  %336 = vst [vmem:[%s3 + $0x30] sm:$0xff] %v328
  %337 = vst [vmem:[%s3 + $0x38] sm:$0xff] %v329
  // Predicated region
  $region14: #{generator_forward.4} parent=0 // pred_check
    _
  $region15: #{generator_forward.4} parent=0 // pred_check_branch
    %339 = sbr.rel (0) target = $region17
  $region16: #{generator_forward.4} parent=0 // pred_region
    _
  $region17: #{generator_forward.4} parent=0 // pred_fallthru
    _
  // Predicated region
  $region18: #{generator_forward.4} parent=0 // pred_check
    _
  $region19: #{generator_forward.4} parent=0 // pred_check_branch
    %341 = sbr.rel (0) target = $region21
  $region20: #{generator_forward.4} parent=0 // pred_region
    _
  $region21: #{generator_forward.4} parent=0 // pred_fallthru
    _

// kernel: generator_forward.5
$region0: #{generator_forward.5}
  #allocation0 [shape = 'u32[]', space=smem, size = 0x4, offset = 0x4, fixed_abs, tag = 'smem constant byte address 0x4 - core index']
  #allocation1 [shape = 'u32[144,128]{1,0:T(1,128)}', space=vmem, size = 0x12000, scoped, tag = 'internal scratch']
  %s0 = inlined_call_operand.vmem [shape: bf16[1,32,1024], index: 0, kind: input, shape index: {}]
  %s1 = inlined_call_operand.vmem [shape: bf16[1,1024,128], index: 1, kind: input, shape index: {}]
  %s2 = inlined_call_operand.vmem [shape: f32[32,1], index: 2, kind: input, shape index: {}]
  %s3 = inlined_call_operand.vmem [shape: f32[32,1], index: 3, kind: input, shape index: {}]
  %s4 = inlined_call_operand.vmem [shape: f32[32,1], index: 4, kind: input, shape index: {}]
  %s5 = inlined_call_operand.vmem [shape: f32[1,32,128], index: 5, kind: output, shape index: {}]
  %s6 = sld [smem:[#allocation0]]
  $region30: #{generator_forward.5} parent=0
    _
  %s8 = ssub.s32 1, %s6
  %s9 = scalar_select 0, %s8, %s6
  // Predicated region
  $region2: #{generator_forward.5} parent=0 // pred_check
    _
  $region3: #{generator_forward.5} parent=0 // pred_check_branch
    %11 = sbr.rel (0) target = $region5
  $region4: #{generator_forward.5} parent=0 // pred_region
    _
  $region5: #{generator_forward.5} parent=0 // pred_fallthru
    _
  // Predicated region
  $region6: #{generator_forward.5} parent=0 // pred_check
    _
  $region7: #{generator_forward.5} parent=0 // pred_check_branch
    %13 = sbr.rel (0) target = $region9
  $region8: #{generator_forward.5} parent=0 // pred_region
    _
  $region9: #{generator_forward.5} parent=0 // pred_fallthru
    _
  // Predicated region
  $region10: #{generator_forward.5} parent=0 // pred_check
    _
  $region11: #{generator_forward.5} parent=0 // pred_check_branch
    %15 = sbr.rel (0) target = $region13
  $region12: #{generator_forward.5} parent=0 // pred_region
    _
  $region13: #{generator_forward.5} parent=0 // pred_fallthru
    _
  // Predicated region
  $region14: #{generator_forward.5} parent=0 // pred_check
    _
  $region15: #{generator_forward.5} parent=0 // pred_check_branch
    %17 = sbr.rel (0) target = $region17
  $region16: #{generator_forward.5} parent=0 // pred_region
    _
  $region17: #{generator_forward.5} parent=0 // pred_fallthru
    _
  // Predicated region
  $region18: #{generator_forward.5} parent=0 // pred_check
    _
  $region19: #{generator_forward.5} parent=0 // pred_check_branch
    %19 = sbr.rel (0) target = $region21
  $region20: #{generator_forward.5} parent=0 // pred_region
    _
  $region21: #{generator_forward.5} parent=0 // pred_fallthru
    _
  %v21 = vld [vmem:[%s0] sm:$0xff]
  %v22 = vld [vmem:[%s0 + $0x8] sm:$0xff]
  %v23 = vld [vmem:[%s0 + $0x10] sm:$0xff]
  %v24 = vld [vmem:[%s0 + $0x18] sm:$0xff]
  %v25 = vld [vmem:[%s0 + $0x20] sm:$0xff]
  %v26 = vld [vmem:[%s0 + $0x28] sm:$0xff]
  %v27 = vld [vmem:[%s0 + $0x30] sm:$0xff]
  %v28 = vld [vmem:[%s0 + $0x38] sm:$0xff]
  %v29 = vld [vmem:[%s0 + $0x40] sm:$0xff]
  %v30 = vld [vmem:[%s0 + $0x48] sm:$0xff]
  %v31 = vld [vmem:[%s0 + $0x50] sm:$0xff]
  %v32 = vld [vmem:[%s0 + $0x58] sm:$0xff]
  %v33 = vld [vmem:[%s0 + $0x60] sm:$0xff]
  %v34 = vld [vmem:[%s0 + $0x68] sm:$0xff]
  %v35 = vld [vmem:[%s0 + $0x70] sm:$0xff]
  %v36 = vld [vmem:[%s0 + $0x78] sm:$0xff]
  %v37 = vld [vmem:[%s1] sm:$0xf]
  %v38 = vld [vmem:[%s1 + $0x4] sm:$0xf]
  %v39 = vld [vmem:[%s1 + $0x8] sm:$0xf]
  %v40 = vld [vmem:[%s1 + $0xc] sm:$0xf]
  %v41 = vld [vmem:[%s1 + $0x10] sm:$0xf]
  %v42 = vld [vmem:[%s1 + $0x14] sm:$0xf]
  %v43 = vld [vmem:[%s1 + $0x18] sm:$0xf]
  %v44 = vld [vmem:[%s1 + $0x1c] sm:$0xf]
  %v45 = vld [vmem:[%s1 + $0x20] sm:$0xf]
  %v46 = vld [vmem:[%s1 + $0x24] sm:$0xf]
  %v47 = vld [vmem:[%s1 + $0x28] sm:$0xf]
  %v48 = vld [vmem:[%s1 + $0x2c] sm:$0xf]
  %v49 = vld [vmem:[%s1 + $0x30] sm:$0xf]
  %v50 = vld [vmem:[%s1 + $0x34] sm:$0xf]
  %v51 = vld [vmem:[%s1 + $0x38] sm:$0xf]
  %v52 = vld [vmem:[%s1 + $0x3c] sm:$0xf]
  %v53 = vld [vmem:[%s1 + $0x40] sm:$0xf]
  %v54 = vld [vmem:[%s1 + $0x44] sm:$0xf]
  %v55 = vld [vmem:[%s1 + $0x48] sm:$0xf]
  %v56 = vld [vmem:[%s1 + $0x4c] sm:$0xf]
  %v57 = vld [vmem:[%s1 + $0x50] sm:$0xf]
  %v58 = vld [vmem:[%s1 + $0x54] sm:$0xf]
  %v59 = vld [vmem:[%s1 + $0x58] sm:$0xf]
  %v60 = vld [vmem:[%s1 + $0x5c] sm:$0xf]
  %v61 = vld [vmem:[%s1 + $0x60] sm:$0xf]
  %v62 = vld [vmem:[%s1 + $0x64] sm:$0xf]
  %v63 = vld [vmem:[%s1 + $0x68] sm:$0xf]
  %v64 = vld [vmem:[%s1 + $0x6c] sm:$0xf]
  %v65 = vld [vmem:[%s1 + $0x70] sm:$0xf]
  %v66 = vld [vmem:[%s1 + $0x74] sm:$0xf]
  %v67 = vld [vmem:[%s1 + $0x78] sm:$0xf]
  %v68 = vld [vmem:[%s1 + $0x7c] sm:$0xf]
  %v69 = vld [vmem:[%s1 + $0x80] sm:$0xf]
  %v70 = vld [vmem:[%s1 + $0x84] sm:$0xf]
  %v71 = vld [vmem:[%s1 + $0x88] sm:$0xf]
  %v72 = vld [vmem:[%s1 + $0x8c] sm:$0xf]
  %v73 = vld [vmem:[%s1 + $0x90] sm:$0xf]
  %v74 = vld [vmem:[%s1 + $0x94] sm:$0xf]
  %v75 = vld [vmem:[%s1 + $0x98] sm:$0xf]
  %v76 = vld [vmem:[%s1 + $0x9c] sm:$0xf]
  %v77 = vld [vmem:[%s1 + $0xa0] sm:$0xf]
  %v78 = vld [vmem:[%s1 + $0xa4] sm:$0xf]
  %v79 = vld [vmem:[%s1 + $0xa8] sm:$0xf]
  %v80 = vld [vmem:[%s1 + $0xac] sm:$0xf]
  %v81 = vld [vmem:[%s1 + $0xb0] sm:$0xf]
  %v82 = vld [vmem:[%s1 + $0xb4] sm:$0xf]
  %v83 = vld [vmem:[%s1 + $0xb8] sm:$0xf]
  %v84 = vld [vmem:[%s1 + $0xbc] sm:$0xf]
  %v85 = vld [vmem:[%s1 + $0xc0] sm:$0xf]
  %v86 = vld [vmem:[%s1 + $0xc4] sm:$0xf]
  %v87 = vld [vmem:[%s1 + $0xc8] sm:$0xf]
  %v88 = vld [vmem:[%s1 + $0xcc] sm:$0xf]
  %v89 = vld [vmem:[%s1 + $0xd0] sm:$0xf]
  %v90 = vld [vmem:[%s1 + $0xd4] sm:$0xf]
  %v91 = vld [vmem:[%s1 + $0xd8] sm:$0xf]
  %v92 = vld [vmem:[%s1 + $0xdc] sm:$0xf]
  %v93 = vld [vmem:[%s1 + $0xe0] sm:$0xf]
  %v94 = vld [vmem:[%s1 + $0xe4] sm:$0xf]
  %v95 = vld [vmem:[%s1 + $0xe8] sm:$0xf]
  %v96 = vld [vmem:[%s1 + $0xec] sm:$0xf]
  %v97 = vld [vmem:[%s1 + $0xf0] sm:$0xf]
  %v98 = vld [vmem:[%s1 + $0xf4] sm:$0xf]
  %v99 = vld [vmem:[%s1 + $0xf8] sm:$0xf]
  %v100 = vld [vmem:[%s1 + $0xfc] sm:$0xf]
  %v101 = vld [vmem:[%s1 + $0x100] sm:$0xf]
  %v102 = vld [vmem:[%s1 + $0x104] sm:$0xf]
  %v103 = vld [vmem:[%s1 + $0x108] sm:$0xf]
  %v104 = vld [vmem:[%s1 + $0x10c] sm:$0xf]
  %v105 = vld [vmem:[%s1 + $0x110] sm:$0xf]
  %v106 = vld [vmem:[%s1 + $0x114] sm:$0xf]
  %v107 = vld [vmem:[%s1 + $0x118] sm:$0xf]
  %v108 = vld [vmem:[%s1 + $0x11c] sm:$0xf]
  %v109 = vld [vmem:[%s1 + $0x120] sm:$0xf]
  %v110 = vld [vmem:[%s1 + $0x124] sm:$0xf]
  %v111 = vld [vmem:[%s1 + $0x128] sm:$0xf]
  %v112 = vld [vmem:[%s1 + $0x12c] sm:$0xf]
  %v113 = vld [vmem:[%s1 + $0x130] sm:$0xf]
  %v114 = vld [vmem:[%s1 + $0x134] sm:$0xf]
  %v115 = vld [vmem:[%s1 + $0x138] sm:$0xf]
  %v116 = vld [vmem:[%s1 + $0x13c] sm:$0xf]
  %v117 = vld [vmem:[%s1 + $0x140] sm:$0xf]
  %v118 = vld [vmem:[%s1 + $0x144] sm:$0xf]
  %v119 = vld [vmem:[%s1 + $0x148] sm:$0xf]
  %v120 = vld [vmem:[%s1 + $0x14c] sm:$0xf]
  %v121 = vld [vmem:[%s1 + $0x150] sm:$0xf]
  %v122 = vld [vmem:[%s1 + $0x154] sm:$0xf]
  %v123 = vld [vmem:[%s1 + $0x158] sm:$0xf]
  %v124 = vld [vmem:[%s1 + $0x15c] sm:$0xf]
  %v125 = vld [vmem:[%s1 + $0x160] sm:$0xf]
  %v126 = vld [vmem:[%s1 + $0x164] sm:$0xf]
  %v127 = vld [vmem:[%s1 + $0x168] sm:$0xf]
  %v128 = vld [vmem:[%s1 + $0x16c] sm:$0xf]
  %v129 = vld [vmem:[%s1 + $0x170] sm:$0xf]
  %v130 = vld [vmem:[%s1 + $0x174] sm:$0xf]
  %v131 = vld [vmem:[%s1 + $0x178] sm:$0xf]
  %v132 = vld [vmem:[%s1 + $0x17c] sm:$0xf]
  %v133 = vld [vmem:[%s1 + $0x180] sm:$0xf]
  %v134 = vld [vmem:[%s1 + $0x184] sm:$0xf]
  %v135 = vld [vmem:[%s1 + $0x188] sm:$0xf]
  %v136 = vld [vmem:[%s1 + $0x18c] sm:$0xf]
  %v137 = vld [vmem:[%s1 + $0x190] sm:$0xf]
  %v138 = vld [vmem:[%s1 + $0x194] sm:$0xf]
  %v139 = vld [vmem:[%s1 + $0x198] sm:$0xf]
  %v140 = vld [vmem:[%s1 + $0x19c] sm:$0xf]
  %v141 = vld [vmem:[%s1 + $0x1a0] sm:$0xf]
  %v142 = vld [vmem:[%s1 + $0x1a4] sm:$0xf]
  %v143 = vld [vmem:[%s1 + $0x1a8] sm:$0xf]
  %v144 = vld [vmem:[%s1 + $0x1ac] sm:$0xf]
  %v145 = vld [vmem:[%s1 + $0x1b0] sm:$0xf]
  %v146 = vld [vmem:[%s1 + $0x1b4] sm:$0xf]
  %v147 = vld [vmem:[%s1 + $0x1b8] sm:$0xf]
  %v148 = vld [vmem:[%s1 + $0x1bc] sm:$0xf]
  %v149 = vld [vmem:[%s1 + $0x1c0] sm:$0xf]
  %v150 = vld [vmem:[%s1 + $0x1c4] sm:$0xf]
  %v151 = vld [vmem:[%s1 + $0x1c8] sm:$0xf]
  %v152 = vld [vmem:[%s1 + $0x1cc] sm:$0xf]
  %v153 = vld [vmem:[%s1 + $0x1d0] sm:$0xf]
  %v154 = vld [vmem:[%s1 + $0x1d4] sm:$0xf]
  %v155 = vld [vmem:[%s1 + $0x1d8] sm:$0xf]
  %v156 = vld [vmem:[%s1 + $0x1dc] sm:$0xf]
  %v157 = vld [vmem:[%s1 + $0x1e0] sm:$0xf]
  %v158 = vld [vmem:[%s1 + $0x1e4] sm:$0xf]
  %v159 = vld [vmem:[%s1 + $0x1e8] sm:$0xf]
  %v160 = vld [vmem:[%s1 + $0x1ec] sm:$0xf]
  %v161 = vld [vmem:[%s1 + $0x1f0] sm:$0xf]
  %v162 = vld [vmem:[%s1 + $0x1f4] sm:$0xf]
  %v163 = vld [vmem:[%s1 + $0x1f8] sm:$0xf]
  %v164 = vld [vmem:[%s1 + $0x1fc] sm:$0xf]
  %v181 = vunpack.c.l.b16 %v21
  %v182 = vunpack.c.h.b16 %v21
  %v183 = vunpack.c.l.b16 %v22
  %v184 = vunpack.c.h.b16 %v22
  %v185 = vunpack.c.l.b16 %v23
  %v186 = vunpack.c.h.b16 %v23
  %v187 = vunpack.c.l.b16 %v24
  %v188 = vunpack.c.h.b16 %v24
  %v189 = vunpack.c.l.b16 %v25
  %v190 = vunpack.c.h.b16 %v25
  %v191 = vunpack.c.l.b16 %v26
  %v192 = vunpack.c.h.b16 %v26
  %v193 = vunpack.c.l.b16 %v27
  %v194 = vunpack.c.h.b16 %v27
  %v195 = vunpack.c.l.b16 %v28
  %v196 = vunpack.c.h.b16 %v28
  %v197 = vunpack.c.l.b16 %v29
  %v198 = vunpack.c.h.b16 %v29
  %v199 = vunpack.c.l.b16 %v30
  %v200 = vunpack.c.h.b16 %v30
  %v201 = vunpack.c.l.b16 %v31
  %v202 = vunpack.c.h.b16 %v31
  %v203 = vunpack.c.l.b16 %v32
  %v204 = vunpack.c.h.b16 %v32
  %v205 = vunpack.c.l.b16 %v33
  %v206 = vunpack.c.h.b16 %v33
  %v207 = vunpack.c.l.b16 %v34
  %v208 = vunpack.c.h.b16 %v34
  %v209 = vunpack.c.l.b16 %v35
  %v210 = vunpack.c.h.b16 %v35
  %v211 = vunpack.c.l.b16 %v36
  %v212 = vunpack.c.h.b16 %v36
  %v213 = vpack.c.b16 %v189, %v181
  %v214 = vpack.c.b16 %v190, %v182
  %v215 = vpack.c.b16 %v191, %v183
  %v216 = vpack.c.b16 %v192, %v184
  %v217 = vpack.c.b16 %v193, %v185
  %v218 = vpack.c.b16 %v194, %v186
  %v219 = vpack.c.b16 %v195, %v187
  %v220 = vpack.c.b16 %v196, %v188
  %v221 = vpack.c.b16 %v205, %v197
  %v222 = vpack.c.b16 %v206, %v198
  %v223 = vpack.c.b16 %v207, %v199
  %v224 = vpack.c.b16 %v208, %v200
  %v225 = vpack.c.b16 %v209, %v201
  %v226 = vpack.c.b16 %v210, %v202
  %v227 = vpack.c.b16 %v211, %v203
  %v228 = vpack.c.b16 %v212, %v204
  %v373 = vunpack.c.l.b16 %v37
  %v374 = vunpack.c.l.b16 %v38
  %v375 = vunpack.c.l.b16 %v39
  %v376 = vunpack.c.l.b16 %v40
  %v377 = vunpack.c.l.b16 %v41
  %v378 = vunpack.c.l.b16 %v42
  %v379 = vunpack.c.l.b16 %v43
  %v380 = vunpack.c.l.b16 %v44
  %v381 = vunpack.c.l.b16 %v45
  %v382 = vunpack.c.l.b16 %v46
  %v383 = vunpack.c.l.b16 %v47
  %v384 = vunpack.c.l.b16 %v48
  %v385 = vunpack.c.l.b16 %v49
  %v386 = vunpack.c.l.b16 %v50
  %v387 = vunpack.c.l.b16 %v51
  %v388 = vunpack.c.l.b16 %v52
  %v389 = vunpack.c.l.b16 %v53
  %v390 = vunpack.c.l.b16 %v54
  %v391 = vunpack.c.l.b16 %v55
  %v392 = vunpack.c.l.b16 %v56
  %v393 = vunpack.c.l.b16 %v57
  %v394 = vunpack.c.l.b16 %v58
  %v395 = vunpack.c.l.b16 %v59
  %v396 = vunpack.c.l.b16 %v60
  %v397 = vunpack.c.l.b16 %v61
  %v398 = vunpack.c.l.b16 %v62
  %v399 = vunpack.c.l.b16 %v63
  %v400 = vunpack.c.l.b16 %v64
  %v401 = vunpack.c.l.b16 %v65
  %v402 = vunpack.c.l.b16 %v66
  %v403 = vunpack.c.l.b16 %v67
  %v404 = vunpack.c.l.b16 %v68
  %v405 = vunpack.c.l.b16 %v69
  %v406 = vunpack.c.l.b16 %v70
  %v407 = vunpack.c.l.b16 %v71
  %v408 = vunpack.c.l.b16 %v72
  %v409 = vunpack.c.l.b16 %v73
  %v410 = vunpack.c.l.b16 %v74
  %v411 = vunpack.c.l.b16 %v75
  %v412 = vunpack.c.l.b16 %v76
  %v413 = vunpack.c.l.b16 %v77
  %v414 = vunpack.c.l.b16 %v78
  %v415 = vunpack.c.l.b16 %v79
  %v416 = vunpack.c.l.b16 %v80
  %v417 = vunpack.c.l.b16 %v81
  %v418 = vunpack.c.l.b16 %v82
  %v419 = vunpack.c.l.b16 %v83
  %v420 = vunpack.c.l.b16 %v84
  %v421 = vunpack.c.l.b16 %v85
  %v422 = vunpack.c.l.b16 %v86
  %v423 = vunpack.c.l.b16 %v87
  %v424 = vunpack.c.l.b16 %v88
  %v425 = vunpack.c.l.b16 %v89
  %v426 = vunpack.c.l.b16 %v90
  %v427 = vunpack.c.l.b16 %v91
  %v428 = vunpack.c.l.b16 %v92
  %v429 = vunpack.c.l.b16 %v93
  %v430 = vunpack.c.l.b16 %v94
  %v431 = vunpack.c.l.b16 %v95
  %v432 = vunpack.c.l.b16 %v96
  %v433 = vunpack.c.l.b16 %v97
  %v434 = vunpack.c.l.b16 %v98
  %v435 = vunpack.c.l.b16 %v99
  %v436 = vunpack.c.l.b16 %v100
  %v437 = vunpack.c.l.b16 %v101
  %v438 = vunpack.c.l.b16 %v102
  %v439 = vunpack.c.l.b16 %v103
  %v440 = vunpack.c.l.b16 %v104
  %v441 = vunpack.c.l.b16 %v105
  %v442 = vunpack.c.l.b16 %v106
  %v443 = vunpack.c.l.b16 %v107
  %v444 = vunpack.c.l.b16 %v108
  %v445 = vunpack.c.l.b16 %v109
  %v446 = vunpack.c.l.b16 %v110
  %v447 = vunpack.c.l.b16 %v111
  %v448 = vunpack.c.l.b16 %v112
  %v449 = vunpack.c.l.b16 %v113
  %v450 = vunpack.c.l.b16 %v114
  %v451 = vunpack.c.l.b16 %v115
  %v452 = vunpack.c.l.b16 %v116
  %v453 = vunpack.c.l.b16 %v117
  %v454 = vunpack.c.l.b16 %v118
  %v455 = vunpack.c.l.b16 %v119
  %v456 = vunpack.c.l.b16 %v120
  %v457 = vunpack.c.l.b16 %v121
  %v458 = vunpack.c.l.b16 %v122
  %v459 = vunpack.c.l.b16 %v123
  %v460 = vunpack.c.l.b16 %v124
  %v461 = vunpack.c.l.b16 %v125
  %v462 = vunpack.c.l.b16 %v126
  %v463 = vunpack.c.l.b16 %v127
  %v464 = vunpack.c.l.b16 %v128
  %v465 = vunpack.c.l.b16 %v129
  %v466 = vunpack.c.l.b16 %v130
  %v467 = vunpack.c.l.b16 %v131
  %v468 = vunpack.c.l.b16 %v132
  %v469 = vunpack.c.l.b16 %v133
  %v470 = vunpack.c.l.b16 %v134
  %v471 = vunpack.c.l.b16 %v135
  %v472 = vunpack.c.l.b16 %v136
  %v473 = vunpack.c.l.b16 %v137
  %v474 = vunpack.c.l.b16 %v138
  %v475 = vunpack.c.l.b16 %v139
  %v476 = vunpack.c.l.b16 %v140
  %v477 = vunpack.c.l.b16 %v141
  %v478 = vunpack.c.l.b16 %v142
  %v479 = vunpack.c.l.b16 %v143
  %v480 = vunpack.c.l.b16 %v144
  %v481 = vunpack.c.l.b16 %v145
  %v482 = vunpack.c.l.b16 %v146
  %v483 = vunpack.c.l.b16 %v147
  %v484 = vunpack.c.l.b16 %v148
  %v485 = vunpack.c.l.b16 %v149
  %v486 = vunpack.c.l.b16 %v150
  %v487 = vunpack.c.l.b16 %v151
  %v488 = vunpack.c.l.b16 %v152
  %v489 = vunpack.c.l.b16 %v153
  %v490 = vunpack.c.l.b16 %v154
  %v491 = vunpack.c.l.b16 %v155
  %v492 = vunpack.c.l.b16 %v156
  %v493 = vunpack.c.l.b16 %v157
  %v494 = vunpack.c.l.b16 %v158
  %v495 = vunpack.c.l.b16 %v159
  %v496 = vunpack.c.l.b16 %v160
  %v497 = vunpack.c.l.b16 %v161
  %v498 = vunpack.c.l.b16 %v162
  %v499 = vunpack.c.l.b16 %v163
  %v500 = vunpack.c.l.b16 %v164
  %v501 = vpack.c.b16 %v374, %v373
  %v502 = vpack.c.b16 %v376, %v375
  %v503 = vpack.c.b16 %v378, %v377
  %v504 = vpack.c.b16 %v380, %v379
  %v505 = vpack.c.b16 %v382, %v381
  %v506 = vpack.c.b16 %v384, %v383
  %v507 = vpack.c.b16 %v386, %v385
  %v508 = vpack.c.b16 %v388, %v387
  %v509 = vpack.c.b16 %v390, %v389
  %v510 = vpack.c.b16 %v392, %v391
  %v511 = vpack.c.b16 %v394, %v393
  %v512 = vpack.c.b16 %v396, %v395
  %v513 = vpack.c.b16 %v398, %v397
  %v514 = vpack.c.b16 %v400, %v399
  %v515 = vpack.c.b16 %v402, %v401
  %v516 = vpack.c.b16 %v404, %v403
  %v517 = vpack.c.b16 %v406, %v405
  %v518 = vpack.c.b16 %v408, %v407
  %v519 = vpack.c.b16 %v410, %v409
  %v520 = vpack.c.b16 %v412, %v411
  %v521 = vpack.c.b16 %v414, %v413
  %v522 = vpack.c.b16 %v416, %v415
  %v523 = vpack.c.b16 %v418, %v417
  %v524 = vpack.c.b16 %v420, %v419
  %v525 = vpack.c.b16 %v422, %v421
  %v526 = vpack.c.b16 %v424, %v423
  %v527 = vpack.c.b16 %v426, %v425
  %v528 = vpack.c.b16 %v428, %v427
  %v529 = vpack.c.b16 %v430, %v429
  %v530 = vpack.c.b16 %v432, %v431
  %v531 = vpack.c.b16 %v434, %v433
  %v532 = vpack.c.b16 %v436, %v435
  %v533 = vpack.c.b16 %v438, %v437
  %v534 = vpack.c.b16 %v440, %v439
  %v535 = vpack.c.b16 %v442, %v441
  %v536 = vpack.c.b16 %v444, %v443
  %v537 = vpack.c.b16 %v446, %v445
  %v538 = vpack.c.b16 %v448, %v447
  %v539 = vpack.c.b16 %v450, %v449
  %v540 = vpack.c.b16 %v452, %v451
  %v541 = vpack.c.b16 %v454, %v453
  %v542 = vpack.c.b16 %v456, %v455
  %v543 = vpack.c.b16 %v458, %v457
  %v544 = vpack.c.b16 %v460, %v459
  %v545 = vpack.c.b16 %v462, %v461
  %v546 = vpack.c.b16 %v464, %v463
  %v547 = vpack.c.b16 %v466, %v465
  %v548 = vpack.c.b16 %v468, %v467
  %v549 = vpack.c.b16 %v470, %v469
  %v550 = vpack.c.b16 %v472, %v471
  %v551 = vpack.c.b16 %v474, %v473
  %v552 = vpack.c.b16 %v476, %v475
  %v553 = vpack.c.b16 %v478, %v477
  %v554 = vpack.c.b16 %v480, %v479
  %v555 = vpack.c.b16 %v482, %v481
  %v556 = vpack.c.b16 %v484, %v483
  %v557 = vpack.c.b16 %v486, %v485
  %v558 = vpack.c.b16 %v488, %v487
  %v559 = vpack.c.b16 %v490, %v489
  %v560 = vpack.c.b16 %v492, %v491
  %v561 = vpack.c.b16 %v494, %v493
  %v562 = vpack.c.b16 %v496, %v495
  %v563 = vpack.c.b16 %v498, %v497
  %v564 = vpack.c.b16 %v500, %v499
  %629 = vmatprep.subr.bf16.mxu0 0
  %630 = vmatpush1.bf16.msra.mxu0 %v508
  %631 = vmatprep.subr.bf16.mxu0 0
  %632 = vmatpush1.bf16.msra.mxu0 %v507
  %633 = vmatprep.subr.bf16.mxu0 0
  %634 = vmatpush1.bf16.msra.mxu0 %v506
  %635 = vmatprep.subr.bf16.mxu0 0
  %636 = vmatpush1.bf16.msra.mxu0 %v505
  %637 = vmatprep.subr.bf16.mxu0 0
  %638 = vmatpush1.bf16.msra.mxu0 %v504
  %639 = vmatprep.subr.bf16.mxu0 0
  %640 = vmatpush1.bf16.msra.mxu0 %v503
  %641 = vmatprep.subr.bf16.mxu0 0
  %642 = vmatpush1.bf16.msra.mxu0 %v502
  %643 = vmatprep.subr.bf16.mxu0 0
  %644 = vmatpush1.bf16.msra.mxu0 %v501
  %645 = vmatprep.subr.bf16.mxu0 0
  %646 = vmatpush2.bf16.msra.mxu0 %v516
  %647 = vmatprep.subr.bf16.mxu0 0
  %648 = vmatpush2.bf16.msra.mxu0 %v515
  %649 = vmatprep.subr.bf16.mxu0 0
  %650 = vmatpush2.bf16.msra.mxu0 %v514
  %651 = vmatprep.subr.bf16.mxu0 0
  %652 = vmatpush2.bf16.msra.mxu0 %v513
  %653 = vmatprep.subr.bf16.mxu0 0
  %654 = vmatpush2.bf16.msra.mxu0 %v512
  %655 = vmatprep.subr.bf16.mxu0 0
  %656 = vmatpush2.bf16.msra.mxu0 %v511
  %657 = vmatprep.subr.bf16.mxu0 0
  %658 = vmatpush2.bf16.msra.mxu0 %v510
  %659 = vmatprep.subr.bf16.mxu0 0
  %660 = vmatpush2.bf16.msra.mxu0 %v509
  %661 = vmatprep.mubr.bf16.mxu0 %v214
  %662 = vmatmul.mubr.bf16.gmra.mxu0 %v213
  %v663 = vpop.f32.mrf.mxu0
  %v664 = vadd.f32 0.0, %v663
  %v665 = vpop.f32.mrf.mxu0
  %v666 = vpop.f32.mrf.mxu0
  %v667 = vadd.f32 0.0, %v666
  %v668 = vpop.f32.mrf.mxu0
  %669 = vmatprep.mubr.bf16.mxu0 %v222
  %670 = vmatmul.mubr.bf16.gmra.mxu0 %v221
  %v671 = vpop.f32.mrf.mxu0
  %v672 = vadd.f32 0.0, %v671
  %v673 = vpop.f32.mrf.mxu0
  %v674 = vpop.f32.mrf.mxu0
  %v675 = vadd.f32 0.0, %v674
  %v676 = vpop.f32.mrf.mxu0
  %677 = vdwg.mxu0
  %678 = vmatprep.subr.bf16.mxu0 0
  %679 = vmatpush1.bf16.msra.mxu0 %v524
  %680 = vmatprep.subr.bf16.mxu0 0
  %681 = vmatpush1.bf16.msra.mxu0 %v523
  %682 = vmatprep.subr.bf16.mxu0 0
  %683 = vmatpush1.bf16.msra.mxu0 %v522
  %684 = vmatprep.subr.bf16.mxu0 0
  %685 = vmatpush1.bf16.msra.mxu0 %v521
  %686 = vmatprep.subr.bf16.mxu0 0
  %687 = vmatpush1.bf16.msra.mxu0 %v520
  %688 = vmatprep.subr.bf16.mxu0 0
  %689 = vmatpush1.bf16.msra.mxu0 %v519
  %690 = vmatprep.subr.bf16.mxu0 0
  %691 = vmatpush1.bf16.msra.mxu0 %v518
  %692 = vmatprep.subr.bf16.mxu0 0
  %693 = vmatpush1.bf16.msra.mxu0 %v517
  %694 = vmatprep.subr.bf16.mxu0 0
  %695 = vmatpush2.bf16.msra.mxu0 %v532
  %696 = vmatprep.subr.bf16.mxu0 0
  %697 = vmatpush2.bf16.msra.mxu0 %v531
  %698 = vmatprep.subr.bf16.mxu0 0
  %699 = vmatpush2.bf16.msra.mxu0 %v530
  %700 = vmatprep.subr.bf16.mxu0 0
  %701 = vmatpush2.bf16.msra.mxu0 %v529
  %702 = vmatprep.subr.bf16.mxu0 0
  %703 = vmatpush2.bf16.msra.mxu0 %v528
  %704 = vmatprep.subr.bf16.mxu0 0
  %705 = vmatpush2.bf16.msra.mxu0 %v527
  %706 = vmatprep.subr.bf16.mxu0 0
  %707 = vmatpush2.bf16.msra.mxu0 %v526
  %708 = vmatprep.subr.bf16.mxu0 0
  %709 = vmatpush2.bf16.msra.mxu0 %v525
  %710 = vmatprep.mubr.bf16.mxu0 %v216
  %711 = vmatmul.mubr.bf16.gmra.mxu0 %v215
  %v712 = vpop.f32.mrf.mxu0
  %v713 = vadd.f32 %v664, %v712
  %v714 = vpop.f32.mrf.mxu0
  %v715 = vpop.f32.mrf.mxu0
  %v716 = vadd.f32 %v667, %v715
  %v717 = vpop.f32.mrf.mxu0
  %718 = vmatprep.mubr.bf16.mxu0 %v224
  %719 = vmatmul.mubr.bf16.gmra.mxu0 %v223
  %v720 = vpop.f32.mrf.mxu0
  %v721 = vadd.f32 %v672, %v720
  %v722 = vpop.f32.mrf.mxu0
  %v723 = vpop.f32.mrf.mxu0
  %v724 = vadd.f32 %v675, %v723
  %v725 = vpop.f32.mrf.mxu0
  %726 = vdwg.mxu0
  %727 = vmatprep.subr.bf16.mxu0 0
  %728 = vmatpush1.bf16.msra.mxu0 %v540
  %729 = vmatprep.subr.bf16.mxu0 0
  %730 = vmatpush1.bf16.msra.mxu0 %v539
  %731 = vmatprep.subr.bf16.mxu0 0
  %732 = vmatpush1.bf16.msra.mxu0 %v538
  %733 = vmatprep.subr.bf16.mxu0 0
  %734 = vmatpush1.bf16.msra.mxu0 %v537
  %735 = vmatprep.subr.bf16.mxu0 0
  %736 = vmatpush1.bf16.msra.mxu0 %v536
  %737 = vmatprep.subr.bf16.mxu0 0
  %738 = vmatpush1.bf16.msra.mxu0 %v535
  %739 = vmatprep.subr.bf16.mxu0 0
  %740 = vmatpush1.bf16.msra.mxu0 %v534
  %741 = vmatprep.subr.bf16.mxu0 0
  %742 = vmatpush1.bf16.msra.mxu0 %v533
  %743 = vmatprep.subr.bf16.mxu0 0
  %744 = vmatpush2.bf16.msra.mxu0 %v548
  %745 = vmatprep.subr.bf16.mxu0 0
  %746 = vmatpush2.bf16.msra.mxu0 %v547
  %747 = vmatprep.subr.bf16.mxu0 0
  %748 = vmatpush2.bf16.msra.mxu0 %v546
  %749 = vmatprep.subr.bf16.mxu0 0
  %750 = vmatpush2.bf16.msra.mxu0 %v545
  %751 = vmatprep.subr.bf16.mxu0 0
  %752 = vmatpush2.bf16.msra.mxu0 %v544
  %753 = vmatprep.subr.bf16.mxu0 0
  %754 = vmatpush2.bf16.msra.mxu0 %v543
  %755 = vmatprep.subr.bf16.mxu0 0
  %756 = vmatpush2.bf16.msra.mxu0 %v542
  %757 = vmatprep.subr.bf16.mxu0 0
  %758 = vmatpush2.bf16.msra.mxu0 %v541
  %759 = vmatprep.mubr.bf16.mxu0 %v218
  %760 = vmatmul.mubr.bf16.gmra.mxu0 %v217
  %v761 = vpop.f32.mrf.mxu0
  %v762 = vadd.f32 %v713, %v761
  %v763 = vpop.f32.mrf.mxu0
  %v764 = vpop.f32.mrf.mxu0
  %v765 = vadd.f32 %v716, %v764
  %v766 = vpop.f32.mrf.mxu0
  %767 = vmatprep.mubr.bf16.mxu0 %v226
  %768 = vmatmul.mubr.bf16.gmra.mxu0 %v225
  %v769 = vpop.f32.mrf.mxu0
  %v770 = vadd.f32 %v721, %v769
  %v771 = vpop.f32.mrf.mxu0
  %v772 = vpop.f32.mrf.mxu0
  %v773 = vadd.f32 %v724, %v772
  %v774 = vpop.f32.mrf.mxu0
  %775 = vdwg.mxu0
  %776 = vmatprep.subr.bf16.mxu0 0
  %777 = vmatpush1.bf16.msra.mxu0 %v556
  %778 = vmatprep.subr.bf16.mxu0 0
  %779 = vmatpush1.bf16.msra.mxu0 %v555
  %780 = vmatprep.subr.bf16.mxu0 0
  %781 = vmatpush1.bf16.msra.mxu0 %v554
  %782 = vmatprep.subr.bf16.mxu0 0
  %783 = vmatpush1.bf16.msra.mxu0 %v553
  %784 = vmatprep.subr.bf16.mxu0 0
  %785 = vmatpush1.bf16.msra.mxu0 %v552
  %786 = vmatprep.subr.bf16.mxu0 0
  %787 = vmatpush1.bf16.msra.mxu0 %v551
  %788 = vmatprep.subr.bf16.mxu0 0
  %789 = vmatpush1.bf16.msra.mxu0 %v550
  %790 = vmatprep.subr.bf16.mxu0 0
  %791 = vmatpush1.bf16.msra.mxu0 %v549
  %792 = vmatprep.subr.bf16.mxu0 0
  %793 = vmatpush2.bf16.msra.mxu0 %v564
  %794 = vmatprep.subr.bf16.mxu0 0
  %795 = vmatpush2.bf16.msra.mxu0 %v563
  %796 = vmatprep.subr.bf16.mxu0 0
  %797 = vmatpush2.bf16.msra.mxu0 %v562
  %798 = vmatprep.subr.bf16.mxu0 0
  %799 = vmatpush2.bf16.msra.mxu0 %v561
  %800 = vmatprep.subr.bf16.mxu0 0
  %801 = vmatpush2.bf16.msra.mxu0 %v560
  %802 = vmatprep.subr.bf16.mxu0 0
  %803 = vmatpush2.bf16.msra.mxu0 %v559
  %804 = vmatprep.subr.bf16.mxu0 0
  %805 = vmatpush2.bf16.msra.mxu0 %v558
  %806 = vmatprep.subr.bf16.mxu0 0
  %807 = vmatpush2.bf16.msra.mxu0 %v557
  %808 = vmatprep.mubr.bf16.mxu0 %v220
  %809 = vmatmul.mubr.bf16.gmra.mxu0 %v219
  %v810 = vpop.f32.mrf.mxu0
  %v811 = vadd.f32 %v762, %v810
  %v812 = vpop.f32.mrf.mxu0
  %v813 = vpop.f32.mrf.mxu0
  %v814 = vadd.f32 %v765, %v813
  %v815 = vpop.f32.mrf.mxu0
  %816 = vmatprep.mubr.bf16.mxu0 %v228
  %817 = vmatmul.mubr.bf16.gmra.mxu0 %v227
  %v818 = vpop.f32.mrf.mxu0
  %v819 = vadd.f32 %v770, %v818
  %v820 = vpop.f32.mrf.mxu0
  %v821 = vpop.f32.mrf.mxu0
  %v822 = vadd.f32 %v773, %v821
  %v823 = vpop.f32.mrf.mxu0
  %824 = vdwg.mxu0
  %825 = vst [vmem:[%s5] sm:$0xff] %v811
  %826 = vst [vmem:[%s5 + $0x8] sm:$0xff] %v814
  %827 = vst [vmem:[%s5 + $0x10] sm:$0xff] %v819
  %828 = vst [vmem:[%s5 + $0x18] sm:$0xff] %v822
  %829 = vadd.xlane.f32.xlu0 %v811
  %v830 = vpop.xlane.xlu0 %829
  %831 = vadd.xlane.f32.xlu0 %v814
  %v832 = vpop.xlane.xlu0 %831
  %833 = vadd.xlane.f32.xlu0 %v819
  %v834 = vpop.xlane.xlu0 %833
  %835 = vadd.xlane.f32.xlu0 %v822
  %v836 = vpop.xlane.xlu0 %835
  %v837 = vmul.f32 %v811, %v811
  %v838 = vmul.f32 %v814, %v814
  %v839 = vmul.f32 %v819, %v819
  %v840 = vmul.f32 %v822, %v822
  %841 = vadd.xlane.f32.xlu0 %v837
  %v842 = vpop.xlane.xlu0 %841
  %843 = vadd.xlane.f32.xlu0 %v838
  %v844 = vpop.xlane.xlu0 %843
  %845 = vadd.xlane.f32.xlu0 %v839
  %v846 = vpop.xlane.xlu0 %845
  %847 = vadd.xlane.f32.xlu0 %v840
  %v848 = vpop.xlane.xlu0 %847
  %v849 = vmul.f32 %v830, 0.010204081
  %v850 = vmul.f32 %v832, 0.010204081
  %v851 = vmul.f32 %v834, 0.010204081
  %v852 = vmul.f32 %v836, 0.010204081
  %v853 = vmul.f32 %v842, 0.010204081
  %v854 = vmul.f32 %v844, 0.010204081
  %v855 = vmul.f32 %v846, 0.010204081
  %v856 = vmul.f32 %v848, 0.010204081
  %v857 = vmul.f32 %v849, %v849
  %v858 = vmul.f32 %v850, %v850
  %v859 = vmul.f32 %v851, %v851
  %v860 = vmul.f32 %v852, %v852
  %v861 = vsub.f32 %v853, %v857
  %v862 = vsub.f32 %v854, %v858
  %v863 = vsub.f32 %v855, %v859
  %v864 = vsub.f32 %v856, %v860
  %v865 = vld [vmem:[%s3] sm:$0xff]
  %v866 = vld [vmem:[%s3 + $0x8] sm:$0xff]
  %v867 = vld [vmem:[%s3 + $0x10] sm:$0xff]
  %v868 = vld [vmem:[%s3 + $0x18] sm:$0xff]
  %v869 = vadd.f32 %v861, 1e-05
  %v870 = vadd.f32 %v862, 1e-05
  %v871 = vadd.f32 %v863, 1e-05
  %v872 = vadd.f32 %v864, 1e-05
  %v873 = vrsqrt.pop %v869
  %v874 = vrsqrt.pop %v870
  %v875 = vrsqrt.pop %v871
  %v876 = vrsqrt.pop %v872
  %v877 = vmul.f32 %v865, %v873
  %v878 = vmul.f32 %v866, %v874
  %v879 = vmul.f32 %v867, %v875
  %v880 = vmul.f32 %v868, %v876
  %v881 = vld [vmem:[%s4] sm:$0xff]
  %v882 = vld [vmem:[%s4 + $0x8] sm:$0xff]
  %v883 = vld [vmem:[%s4 + $0x10] sm:$0xff]
  %v884 = vld [vmem:[%s4 + $0x18] sm:$0xff]
  %v885 = vmul.f32 %v849, %v877
  %v886 = vmul.f32 %v850, %v878
  %v887 = vmul.f32 %v851, %v879
  %v888 = vmul.f32 %v852, %v880
  %v889 = vsub.f32 %v881, %v885
  %v890 = vsub.f32 %v882, %v886
  %v891 = vsub.f32 %v883, %v887
  %v892 = vsub.f32 %v884, %v888
  %v893 = vld [vmem:[%s5] sm:$0xff]
  %v894 = vld [vmem:[%s5 + $0x8] sm:$0xff]
  %v895 = vld [vmem:[%s5 + $0x10] sm:$0xff]
  %v896 = vld [vmem:[%s5 + $0x18] sm:$0xff]
  %898 = vset.pattern.permute.xlu0 0
  %899 = vperm.xlu0 %898, %v877
  %v900 = vpop.permute.xlu0 %899
  %903 = vset.pattern.permute.xlu0 0
  %904 = vperm.xlu0 %903, %v878
  %v905 = vpop.permute.xlu0 %904
  %908 = vset.pattern.permute.xlu0 0
  %909 = vperm.xlu0 %908, %v879
  %v910 = vpop.permute.xlu0 %909
  %913 = vset.pattern.permute.xlu0 0
  %914 = vperm.xlu0 %913, %v880
  %v915 = vpop.permute.xlu0 %914
  %v917 = vmul.f32 %v893, %v900
  %v918 = vmul.f32 %v894, %v905
  %v919 = vmul.f32 %v895, %v910
  %v920 = vmul.f32 %v896, %v915
  %922 = vset.pattern.permute.xlu0 0
  %923 = vperm.xlu0 %922, %v889
  %v924 = vpop.permute.xlu0 %923
  %927 = vset.pattern.permute.xlu0 0
  %928 = vperm.xlu0 %927, %v890
  %v929 = vpop.permute.xlu0 %928
  %932 = vset.pattern.permute.xlu0 0
  %933 = vperm.xlu0 %932, %v891
  %v934 = vpop.permute.xlu0 %933
  %937 = vset.pattern.permute.xlu0 0
  %938 = vperm.xlu0 %937, %v892
  %v939 = vpop.permute.xlu0 %938
  %v941 = vadd.f32 %v917, %v924
  %v942 = vadd.f32 %v918, %v929
  %v943 = vadd.f32 %v919, %v934
  %v944 = vadd.f32 %v920, %v939
  %v945 = vmax.f32 %v941, 0.0
  %v946 = vmax.f32 %v942, 0.0
  %v947 = vmax.f32 %v943, 0.0
  %v948 = vmax.f32 %v944, 0.0
  %949 = vst [vmem:[%s5] sm:$0xff] %v945
  %950 = vst [vmem:[%s5 + $0x8] sm:$0xff] %v946
  %951 = vst [vmem:[%s5 + $0x10] sm:$0xff] %v947
  %952 = vst [vmem:[%s5 + $0x18] sm:$0xff] %v948
  // Predicated region
  $region22: #{generator_forward.5} parent=0 // pred_check
    _
  $region23: #{generator_forward.5} parent=0 // pred_check_branch
    %954 = sbr.rel (0) target = $region25
  $region24: #{generator_forward.5} parent=0 // pred_region
    _
  $region25: #{generator_forward.5} parent=0 // pred_fallthru
    _
  // Predicated region
  $region26: #{generator_forward.5} parent=0 // pred_check
    _
  $region27: #{generator_forward.5} parent=0 // pred_check_branch
    %956 = sbr.rel (0) target = $region29
  $region28: #{generator_forward.5} parent=0 // pred_region
    _
  $region29: #{generator_forward.5} parent=0 // pred_fallthru
    _

// kernel: generator_forward.6
$region0: #{generator_forward.6}
  #allocation0 [shape = 'u32[]', space=smem, size = 0x4, offset = 0x4, fixed_abs, tag = 'smem constant byte address 0x4 - core index']
  #allocation1 [shape = 'u32[144,128]{1,0:T(1,128)}', space=vmem, size = 0x12000, scoped, tag = 'internal scratch']
  %s0 = inlined_call_operand.vmem [shape: bf16[4,16,128], index: 0, kind: input, shape index: {}]
  %s1 = inlined_call_operand.vmem [shape: bf16[4,128,128], index: 1, kind: input, shape index: {}]
  %s2 = inlined_call_operand.vmem [shape: f32[16,1], index: 2, kind: input, shape index: {}]
  %s3 = inlined_call_operand.vmem [shape: f32[16,1], index: 3, kind: input, shape index: {}]
  %s4 = inlined_call_operand.vmem [shape: f32[16,1], index: 4, kind: input, shape index: {}]
  %s5 = inlined_call_operand.vmem [shape: f32[4,16,128], index: 5, kind: output, shape index: {}]
  %s6 = sld [smem:[#allocation0]]
  $region30: #{generator_forward.6} parent=0
    _
  %s8 = ssub.s32 1, %s6
  %s9 = scalar_select 0, %s8, %s6
  // Predicated region
  $region2: #{generator_forward.6} parent=0 // pred_check
    _
  $region3: #{generator_forward.6} parent=0 // pred_check_branch
    %11 = sbr.rel (0) target = $region5
  $region4: #{generator_forward.6} parent=0 // pred_region
    _
  $region5: #{generator_forward.6} parent=0 // pred_fallthru
    _
  // Predicated region
  $region6: #{generator_forward.6} parent=0 // pred_check
    _
  $region7: #{generator_forward.6} parent=0 // pred_check_branch
    %13 = sbr.rel (0) target = $region9
  $region8: #{generator_forward.6} parent=0 // pred_region
    _
  $region9: #{generator_forward.6} parent=0 // pred_fallthru
    _
  // Predicated region
  $region10: #{generator_forward.6} parent=0 // pred_check
    _
  $region11: #{generator_forward.6} parent=0 // pred_check_branch
    %15 = sbr.rel (0) target = $region13
  $region12: #{generator_forward.6} parent=0 // pred_region
    _
  $region13: #{generator_forward.6} parent=0 // pred_fallthru
    _
  // Predicated region
  $region14: #{generator_forward.6} parent=0 // pred_check
    _
  $region15: #{generator_forward.6} parent=0 // pred_check_branch
    %17 = sbr.rel (0) target = $region17
  $region16: #{generator_forward.6} parent=0 // pred_region
    _
  $region17: #{generator_forward.6} parent=0 // pred_fallthru
    _
  // Predicated region
  $region18: #{generator_forward.6} parent=0 // pred_check
    _
  $region19: #{generator_forward.6} parent=0 // pred_check_branch
    %19 = sbr.rel (0) target = $region21
  $region20: #{generator_forward.6} parent=0 // pred_region
    _
  $region21: #{generator_forward.6} parent=0 // pred_fallthru
    _
  %v21 = vld [vmem:[%s0] sm:$0xf]
  %v22 = vld [vmem:[%s0 + $0x4] sm:$0xf]
  %v23 = vld [vmem:[%s1] sm:$0xf]
  %v24 = vld [vmem:[%s1 + $0x4] sm:$0xf]
  %v25 = vld [vmem:[%s1 + $0x8] sm:$0xf]
  %v26 = vld [vmem:[%s1 + $0xc] sm:$0xf]
  %v27 = vld [vmem:[%s1 + $0x10] sm:$0xf]
  %v28 = vld [vmem:[%s1 + $0x14] sm:$0xf]
  %v29 = vld [vmem:[%s1 + $0x18] sm:$0xf]
  %v30 = vld [vmem:[%s1 + $0x1c] sm:$0xf]
  %v31 = vld [vmem:[%s1 + $0x20] sm:$0xf]
  %v32 = vld [vmem:[%s1 + $0x24] sm:$0xf]
  %v33 = vld [vmem:[%s1 + $0x28] sm:$0xf]
  %v34 = vld [vmem:[%s1 + $0x2c] sm:$0xf]
  %v35 = vld [vmem:[%s1 + $0x30] sm:$0xf]
  %v36 = vld [vmem:[%s1 + $0x34] sm:$0xf]
  %v37 = vld [vmem:[%s1 + $0x38] sm:$0xf]
  %v38 = vld [vmem:[%s1 + $0x3c] sm:$0xf]
  %v41 = vunpack.c.l.b16 %v21
  %v42 = vunpack.c.l.b16 %v22
  %v43 = vpack.c.b16 %v42, %v41
  %v61 = vunpack.c.l.b16 %v23
  %v62 = vunpack.c.l.b16 %v24
  %v63 = vunpack.c.l.b16 %v25
  %v64 = vunpack.c.l.b16 %v26
  %v65 = vunpack.c.l.b16 %v27
  %v66 = vunpack.c.l.b16 %v28
  %v67 = vunpack.c.l.b16 %v29
  %v68 = vunpack.c.l.b16 %v30
  %v69 = vunpack.c.l.b16 %v31
  %v70 = vunpack.c.l.b16 %v32
  %v71 = vunpack.c.l.b16 %v33
  %v72 = vunpack.c.l.b16 %v34
  %v73 = vunpack.c.l.b16 %v35
  %v74 = vunpack.c.l.b16 %v36
  %v75 = vunpack.c.l.b16 %v37
  %v76 = vunpack.c.l.b16 %v38
  %v77 = vpack.c.b16 %v62, %v61
  %v78 = vpack.c.b16 %v64, %v63
  %v79 = vpack.c.b16 %v66, %v65
  %v80 = vpack.c.b16 %v68, %v67
  %v81 = vpack.c.b16 %v70, %v69
  %v82 = vpack.c.b16 %v72, %v71
  %v83 = vpack.c.b16 %v74, %v73
  %v84 = vpack.c.b16 %v76, %v75
  %93 = vmatprep.subr.bf16.mxu0 0
  %94 = vmatpush1.bf16.msra.mxu0 %v84
  %95 = vmatprep.subr.bf16.mxu0 0
  %96 = vmatpush1.bf16.msra.mxu0 %v83
  %97 = vmatprep.subr.bf16.mxu0 0
  %98 = vmatpush1.bf16.msra.mxu0 %v82
  %99 = vmatprep.subr.bf16.mxu0 0
  %100 = vmatpush1.bf16.msra.mxu0 %v81
  %101 = vmatprep.subr.bf16.mxu0 0
  %102 = vmatpush1.bf16.msra.mxu0 %v80
  %103 = vmatprep.subr.bf16.mxu0 0
  %104 = vmatpush1.bf16.msra.mxu0 %v79
  %105 = vmatprep.subr.bf16.mxu0 0
  %106 = vmatpush1.bf16.msra.mxu0 %v78
  %107 = vmatprep.subr.bf16.mxu0 0
  %108 = vmatpush1.bf16.msra.mxu0 %v77
  %109 = vmatprep.subr.bf16.mxu0 0
  %110 = vmatpush2.bf16.msra.mxu0 0
  %111 = vmatprep.subr.bf16.mxu0 0
  %112 = vmatpush2.bf16.msra.mxu0 0
  %113 = vmatprep.subr.bf16.mxu0 0
  %114 = vmatpush2.bf16.msra.mxu0 0
  %115 = vmatprep.subr.bf16.mxu0 0
  %116 = vmatpush2.bf16.msra.mxu0 0
  %117 = vmatprep.subr.bf16.mxu0 0
  %118 = vmatpush2.bf16.msra.mxu0 0
  %119 = vmatprep.subr.bf16.mxu0 0
  %120 = vmatpush2.bf16.msra.mxu0 0
  %121 = vmatprep.subr.bf16.mxu0 0
  %122 = vmatpush2.bf16.msra.mxu0 0
  %123 = vmatprep.subr.bf16.mxu0 0
  %124 = vmatpush2.bf16.msra.mxu0 0
  %125 = vmatprep.mubr.bf16.mxu0 0
  %126 = vmatmul.mubr.bf16.gmra.mxu0 %v43
  %v127 = vpop.f32.mrf.mxu0
  %v128 = vadd.f32 0.0, %v127
  %v129 = vpop.f32.mrf.mxu0
  %v130 = vpop.f32.mrf.mxu0
  %v131 = vadd.f32 0.0, %v130
  %v132 = vpop.f32.mrf.mxu0
  %133 = vdwg.mxu0
  %134 = vst [vmem:[%s5] sm:$0xff] %v128
  %135 = vst [vmem:[%s5 + $0x8] sm:$0xff] %v131
  %136 = vadd.xlane.f32.xlu0 %v128
  %v137 = vpop.xlane.xlu0 %136
  %138 = vadd.xlane.f32.xlu0 %v131
  %v139 = vpop.xlane.xlu0 %138
  %v140 = vmul.f32 %v128, %v128
  %v141 = vmul.f32 %v131, %v131
  %142 = vadd.xlane.f32.xlu0 %v140
  %v143 = vpop.xlane.xlu0 %142
  %144 = vadd.xlane.f32.xlu0 %v141
  %v145 = vpop.xlane.xlu0 %144
  %s146 = scalar_lea.vmem %s0, 8
  %v147 = vld [vmem:[%s146] sm:$0xf]
  %v148 = vld [vmem:[%s146 + $0x4] sm:$0xf]
  %s149 = scalar_lea.vmem %s1, 64
  %v150 = vld [vmem:[%s149] sm:$0xf]
  %v151 = vld [vmem:[%s149 + $0x4] sm:$0xf]
  %v152 = vld [vmem:[%s149 + $0x8] sm:$0xf]
  %v153 = vld [vmem:[%s149 + $0xc] sm:$0xf]
  %v154 = vld [vmem:[%s149 + $0x10] sm:$0xf]
  %v155 = vld [vmem:[%s149 + $0x14] sm:$0xf]
  %v156 = vld [vmem:[%s149 + $0x18] sm:$0xf]
  %v157 = vld [vmem:[%s149 + $0x1c] sm:$0xf]
  %v158 = vld [vmem:[%s149 + $0x20] sm:$0xf]
  %v159 = vld [vmem:[%s149 + $0x24] sm:$0xf]
  %v160 = vld [vmem:[%s149 + $0x28] sm:$0xf]
  %v161 = vld [vmem:[%s149 + $0x2c] sm:$0xf]
  %v162 = vld [vmem:[%s149 + $0x30] sm:$0xf]
  %v163 = vld [vmem:[%s149 + $0x34] sm:$0xf]
  %v164 = vld [vmem:[%s149 + $0x38] sm:$0xf]
  %v165 = vld [vmem:[%s149 + $0x3c] sm:$0xf]
  %v168 = vunpack.c.l.b16 %v147
  %v169 = vunpack.c.l.b16 %v148
  %v170 = vpack.c.b16 %v169, %v168
  %v188 = vunpack.c.l.b16 %v150
  %v189 = vunpack.c.l.b16 %v151
  %v190 = vunpack.c.l.b16 %v152
  %v191 = vunpack.c.l.b16 %v153
  %v192 = vunpack.c.l.b16 %v154
  %v193 = vunpack.c.l.b16 %v155
  %v194 = vunpack.c.l.b16 %v156
  %v195 = vunpack.c.l.b16 %v157
  %v196 = vunpack.c.l.b16 %v158
  %v197 = vunpack.c.l.b16 %v159
  %v198 = vunpack.c.l.b16 %v160
  %v199 = vunpack.c.l.b16 %v161
  %v200 = vunpack.c.l.b16 %v162
  %v201 = vunpack.c.l.b16 %v163
  %v202 = vunpack.c.l.b16 %v164
  %v203 = vunpack.c.l.b16 %v165
  %v204 = vpack.c.b16 %v189, %v188
  %v205 = vpack.c.b16 %v191, %v190
  %v206 = vpack.c.b16 %v193, %v192
  %v207 = vpack.c.b16 %v195, %v194
  %v208 = vpack.c.b16 %v197, %v196
  %v209 = vpack.c.b16 %v199, %v198
  %v210 = vpack.c.b16 %v201, %v200
  %v211 = vpack.c.b16 %v203, %v202
  %220 = vmatprep.subr.bf16.mxu0 0
  %221 = vmatpush1.bf16.msra.mxu0 %v211
  %222 = vmatprep.subr.bf16.mxu0 0
  %223 = vmatpush1.bf16.msra.mxu0 %v210
  %224 = vmatprep.subr.bf16.mxu0 0
  %225 = vmatpush1.bf16.msra.mxu0 %v209
  %226 = vmatprep.subr.bf16.mxu0 0
  %227 = vmatpush1.bf16.msra.mxu0 %v208
  %228 = vmatprep.subr.bf16.mxu0 0
  %229 = vmatpush1.bf16.msra.mxu0 %v207
  %230 = vmatprep.subr.bf16.mxu0 0
  %231 = vmatpush1.bf16.msra.mxu0 %v206
  %232 = vmatprep.subr.bf16.mxu0 0
  %233 = vmatpush1.bf16.msra.mxu0 %v205
  %234 = vmatprep.subr.bf16.mxu0 0
  %235 = vmatpush1.bf16.msra.mxu0 %v204
  %236 = vmatprep.subr.bf16.mxu0 0
  %237 = vmatpush2.bf16.msra.mxu0 0
  %238 = vmatprep.subr.bf16.mxu0 0
  %239 = vmatpush2.bf16.msra.mxu0 0
  %240 = vmatprep.subr.bf16.mxu0 0
  %241 = vmatpush2.bf16.msra.mxu0 0
  %242 = vmatprep.subr.bf16.mxu0 0
  %243 = vmatpush2.bf16.msra.mxu0 0
  %244 = vmatprep.subr.bf16.mxu0 0
  %245 = vmatpush2.bf16.msra.mxu0 0
  %246 = vmatprep.subr.bf16.mxu0 0
  %247 = vmatpush2.bf16.msra.mxu0 0
  %248 = vmatprep.subr.bf16.mxu0 0
  %249 = vmatpush2.bf16.msra.mxu0 0
  %250 = vmatprep.subr.bf16.mxu0 0
  %251 = vmatpush2.bf16.msra.mxu0 0
  %252 = vmatprep.mubr.bf16.mxu0 0
  %253 = vmatmul.mubr.bf16.gmra.mxu0 %v170
  %v254 = vpop.f32.mrf.mxu0
  %v255 = vadd.f32 0.0, %v254
  %v256 = vpop.f32.mrf.mxu0
  %v257 = vpop.f32.mrf.mxu0
  %v258 = vadd.f32 0.0, %v257
  %v259 = vpop.f32.mrf.mxu0
  %260 = vdwg.mxu0
  %s261 = scalar_lea.vmem %s5, 16
  %262 = vst [vmem:[%s261] sm:$0xff] %v255
  %263 = vst [vmem:[%s261 + $0x8] sm:$0xff] %v258
  %264 = vadd.xlane.f32.xlu0 %v255
  %v265 = vpop.xlane.xlu0 %264
  %266 = vadd.xlane.f32.xlu0 %v258
  %v267 = vpop.xlane.xlu0 %266
  %v268 = vmul.f32 %v255, %v255
  %v269 = vmul.f32 %v258, %v258
  %270 = vadd.xlane.f32.xlu0 %v268
  %v271 = vpop.xlane.xlu0 %270
  %272 = vadd.xlane.f32.xlu0 %v269
  %v273 = vpop.xlane.xlu0 %272
  %v274 = vadd.f32 %v137, %v265
  %v275 = vadd.f32 %v139, %v267
  %v276 = vadd.f32 %v143, %v271
  %v277 = vadd.f32 %v145, %v273
  %s278 = scalar_lea.vmem %s0, 16
  %v279 = vld [vmem:[%s278] sm:$0xf]
  %v280 = vld [vmem:[%s278 + $0x4] sm:$0xf]
  %s281 = scalar_lea.vmem %s1, 128
  %v282 = vld [vmem:[%s281] sm:$0xf]
  %v283 = vld [vmem:[%s281 + $0x4] sm:$0xf]
  %v284 = vld [vmem:[%s281 + $0x8] sm:$0xf]
  %v285 = vld [vmem:[%s281 + $0xc] sm:$0xf]
  %v286 = vld [vmem:[%s281 + $0x10] sm:$0xf]
  %v287 = vld [vmem:[%s281 + $0x14] sm:$0xf]
  %v288 = vld [vmem:[%s281 + $0x18] sm:$0xf]
  %v289 = vld [vmem:[%s281 + $0x1c] sm:$0xf]
  %v290 = vld [vmem:[%s281 + $0x20] sm:$0xf]
  %v291 = vld [vmem:[%s281 + $0x24] sm:$0xf]
  %v292 = vld [vmem:[%s281 + $0x28] sm:$0xf]
  %v293 = vld [vmem:[%s281 + $0x2c] sm:$0xf]
  %v294 = vld [vmem:[%s281 + $0x30] sm:$0xf]
  %v295 = vld [vmem:[%s281 + $0x34] sm:$0xf]
  %v296 = vld [vmem:[%s281 + $0x38] sm:$0xf]
  %v297 = vld [vmem:[%s281 + $0x3c] sm:$0xf]
  %v300 = vunpack.c.l.b16 %v279
  %v301 = vunpack.c.l.b16 %v280
  %v302 = vpack.c.b16 %v301, %v300
  %v320 = vunpack.c.l.b16 %v282
  %v321 = vunpack.c.l.b16 %v283
  %v322 = vunpack.c.l.b16 %v284
  %v323 = vunpack.c.l.b16 %v285
  %v324 = vunpack.c.l.b16 %v286
  %v325 = vunpack.c.l.b16 %v287
  %v326 = vunpack.c.l.b16 %v288
  %v327 = vunpack.c.l.b16 %v289
  %v328 = vunpack.c.l.b16 %v290
  %v329 = vunpack.c.l.b16 %v291
  %v330 = vunpack.c.l.b16 %v292
  %v331 = vunpack.c.l.b16 %v293
  %v332 = vunpack.c.l.b16 %v294
  %v333 = vunpack.c.l.b16 %v295
  %v334 = vunpack.c.l.b16 %v296
  %v335 = vunpack.c.l.b16 %v297
  %v336 = vpack.c.b16 %v321, %v320
  %v337 = vpack.c.b16 %v323, %v322
  %v338 = vpack.c.b16 %v325, %v324
  %v339 = vpack.c.b16 %v327, %v326
  %v340 = vpack.c.b16 %v329, %v328
  %v341 = vpack.c.b16 %v331, %v330
  %v342 = vpack.c.b16 %v333, %v332
  %v343 = vpack.c.b16 %v335, %v334
  %352 = vmatprep.subr.bf16.mxu0 0
  %353 = vmatpush1.bf16.msra.mxu0 %v343
  %354 = vmatprep.subr.bf16.mxu0 0
  %355 = vmatpush1.bf16.msra.mxu0 %v342
  %356 = vmatprep.subr.bf16.mxu0 0
  %357 = vmatpush1.bf16.msra.mxu0 %v341
  %358 = vmatprep.subr.bf16.mxu0 0
  %359 = vmatpush1.bf16.msra.mxu0 %v340
  %360 = vmatprep.subr.bf16.mxu0 0
  %361 = vmatpush1.bf16.msra.mxu0 %v339
  %362 = vmatprep.subr.bf16.mxu0 0
  %363 = vmatpush1.bf16.msra.mxu0 %v338
  %364 = vmatprep.subr.bf16.mxu0 0
  %365 = vmatpush1.bf16.msra.mxu0 %v337
  %366 = vmatprep.subr.bf16.mxu0 0
  %367 = vmatpush1.bf16.msra.mxu0 %v336
  %368 = vmatprep.subr.bf16.mxu0 0
  %369 = vmatpush2.bf16.msra.mxu0 0
  %370 = vmatprep.subr.bf16.mxu0 0
  %371 = vmatpush2.bf16.msra.mxu0 0
  %372 = vmatprep.subr.bf16.mxu0 0
  %373 = vmatpush2.bf16.msra.mxu0 0
  %374 = vmatprep.subr.bf16.mxu0 0
  %375 = vmatpush2.bf16.msra.mxu0 0
  %376 = vmatprep.subr.bf16.mxu0 0
  %377 = vmatpush2.bf16.msra.mxu0 0
  %378 = vmatprep.subr.bf16.mxu0 0
  %379 = vmatpush2.bf16.msra.mxu0 0
  %380 = vmatprep.subr.bf16.mxu0 0
  %381 = vmatpush2.bf16.msra.mxu0 0
  %382 = vmatprep.subr.bf16.mxu0 0
  %383 = vmatpush2.bf16.msra.mxu0 0
  %384 = vmatprep.mubr.bf16.mxu0 0
  %385 = vmatmul.mubr.bf16.gmra.mxu0 %v302
  %v386 = vpop.f32.mrf.mxu0
  %v387 = vadd.f32 0.0, %v386
  %v388 = vpop.f32.mrf.mxu0
  %v389 = vpop.f32.mrf.mxu0
  %v390 = vadd.f32 0.0, %v389
  %v391 = vpop.f32.mrf.mxu0
  %392 = vdwg.mxu0
  %s393 = scalar_lea.vmem %s5, 32
  %394 = vst [vmem:[%s393] sm:$0xff] %v387
  %395 = vst [vmem:[%s393 + $0x8] sm:$0xff] %v390
  %396 = vadd.xlane.f32.xlu0 %v387
  %v397 = vpop.xlane.xlu0 %396
  %398 = vadd.xlane.f32.xlu0 %v390
  %v399 = vpop.xlane.xlu0 %398
  %v400 = vmul.f32 %v387, %v387
  %v401 = vmul.f32 %v390, %v390
  %402 = vadd.xlane.f32.xlu0 %v400
  %v403 = vpop.xlane.xlu0 %402
  %404 = vadd.xlane.f32.xlu0 %v401
  %v405 = vpop.xlane.xlu0 %404
  %v406 = vadd.f32 %v274, %v397
  %v407 = vadd.f32 %v275, %v399
  %v408 = vadd.f32 %v276, %v403
  %v409 = vadd.f32 %v277, %v405
  %s410 = scalar_lea.vmem %s0, 24
  %v411 = vld [vmem:[%s410] sm:$0xf]
  %v412 = vld [vmem:[%s410 + $0x4] sm:$0xf]
  %s413 = scalar_lea.vmem %s1, 192
  %v414 = vld [vmem:[%s413] sm:$0xf]
  %v415 = vld [vmem:[%s413 + $0x4] sm:$0xf]
  %v416 = vld [vmem:[%s413 + $0x8] sm:$0xf]
  %v417 = vld [vmem:[%s413 + $0xc] sm:$0xf]
  %v418 = vld [vmem:[%s413 + $0x10] sm:$0xf]
  %v419 = vld [vmem:[%s413 + $0x14] sm:$0xf]
  %v420 = vld [vmem:[%s413 + $0x18] sm:$0xf]
  %v421 = vld [vmem:[%s413 + $0x1c] sm:$0xf]
  %v422 = vld [vmem:[%s413 + $0x20] sm:$0xf]
  %v423 = vld [vmem:[%s413 + $0x24] sm:$0xf]
  %v424 = vld [vmem:[%s413 + $0x28] sm:$0xf]
  %v425 = vld [vmem:[%s413 + $0x2c] sm:$0xf]
  %v426 = vld [vmem:[%s413 + $0x30] sm:$0xf]
  %v427 = vld [vmem:[%s413 + $0x34] sm:$0xf]
  %v428 = vld [vmem:[%s413 + $0x38] sm:$0xf]
  %v429 = vld [vmem:[%s413 + $0x3c] sm:$0xf]
  %v432 = vunpack.c.l.b16 %v411
  %v433 = vunpack.c.l.b16 %v412
  %v434 = vpack.c.b16 %v433, %v432
  %v452 = vunpack.c.l.b16 %v414
  %v453 = vunpack.c.l.b16 %v415
  %v454 = vunpack.c.l.b16 %v416
  %v455 = vunpack.c.l.b16 %v417
  %v456 = vunpack.c.l.b16 %v418
  %v457 = vunpack.c.l.b16 %v419
  %v458 = vunpack.c.l.b16 %v420
  %v459 = vunpack.c.l.b16 %v421
  %v460 = vunpack.c.l.b16 %v422
  %v461 = vunpack.c.l.b16 %v423
  %v462 = vunpack.c.l.b16 %v424
  %v463 = vunpack.c.l.b16 %v425
  %v464 = vunpack.c.l.b16 %v426
  %v465 = vunpack.c.l.b16 %v427
  %v466 = vunpack.c.l.b16 %v428
  %v467 = vunpack.c.l.b16 %v429
  %v468 = vpack.c.b16 %v453, %v452
  %v469 = vpack.c.b16 %v455, %v454
  %v470 = vpack.c.b16 %v457, %v456
  %v471 = vpack.c.b16 %v459, %v458
  %v472 = vpack.c.b16 %v461, %v460
  %v473 = vpack.c.b16 %v463, %v462
  %v474 = vpack.c.b16 %v465, %v464
  %v475 = vpack.c.b16 %v467, %v466
  %484 = vmatprep.subr.bf16.mxu0 0
  %485 = vmatpush1.bf16.msra.mxu0 %v475
  %486 = vmatprep.subr.bf16.mxu0 0
  %487 = vmatpush1.bf16.msra.mxu0 %v474
  %488 = vmatprep.subr.bf16.mxu0 0
  %489 = vmatpush1.bf16.msra.mxu0 %v473
  %490 = vmatprep.subr.bf16.mxu0 0
  %491 = vmatpush1.bf16.msra.mxu0 %v472
  %492 = vmatprep.subr.bf16.mxu0 0
  %493 = vmatpush1.bf16.msra.mxu0 %v471
  %494 = vmatprep.subr.bf16.mxu0 0
  %495 = vmatpush1.bf16.msra.mxu0 %v470
  %496 = vmatprep.subr.bf16.mxu0 0
  %497 = vmatpush1.bf16.msra.mxu0 %v469
  %498 = vmatprep.subr.bf16.mxu0 0
  %499 = vmatpush1.bf16.msra.mxu0 %v468
  %500 = vmatprep.subr.bf16.mxu0 0
  %501 = vmatpush2.bf16.msra.mxu0 0
  %502 = vmatprep.subr.bf16.mxu0 0
  %503 = vmatpush2.bf16.msra.mxu0 0
  %504 = vmatprep.subr.bf16.mxu0 0
  %505 = vmatpush2.bf16.msra.mxu0 0
  %506 = vmatprep.subr.bf16.mxu0 0
  %507 = vmatpush2.bf16.msra.mxu0 0
  %508 = vmatprep.subr.bf16.mxu0 0
  %509 = vmatpush2.bf16.msra.mxu0 0
  %510 = vmatprep.subr.bf16.mxu0 0
  %511 = vmatpush2.bf16.msra.mxu0 0
  %512 = vmatprep.subr.bf16.mxu0 0
  %513 = vmatpush2.bf16.msra.mxu0 0
  %514 = vmatprep.subr.bf16.mxu0 0
  %515 = vmatpush2.bf16.msra.mxu0 0
  %516 = vmatprep.mubr.bf16.mxu0 0
  %517 = vmatmul.mubr.bf16.gmra.mxu0 %v434
  %v518 = vpop.f32.mrf.mxu0
  %v519 = vadd.f32 0.0, %v518
  %v520 = vpop.f32.mrf.mxu0
  %v521 = vpop.f32.mrf.mxu0
  %v522 = vadd.f32 0.0, %v521
  %v523 = vpop.f32.mrf.mxu0
  %524 = vdwg.mxu0
  %s525 = scalar_lea.vmem %s5, 48
  %526 = vst [vmem:[%s525] sm:$0xff] %v519
  %527 = vst [vmem:[%s525 + $0x8] sm:$0xff] %v522
  %528 = vadd.xlane.f32.xlu0 %v519
  %v529 = vpop.xlane.xlu0 %528
  %530 = vadd.xlane.f32.xlu0 %v522
  %v531 = vpop.xlane.xlu0 %530
  %v532 = vmul.f32 %v519, %v519
  %v533 = vmul.f32 %v522, %v522
  %534 = vadd.xlane.f32.xlu0 %v532
  %v535 = vpop.xlane.xlu0 %534
  %536 = vadd.xlane.f32.xlu0 %v533
  %v537 = vpop.xlane.xlu0 %536
  %v538 = vadd.f32 %v406, %v529
  %v539 = vadd.f32 %v407, %v531
  %v540 = vadd.f32 %v408, %v535
  %v541 = vadd.f32 %v409, %v537
  %v542 = vmul.f32 %v538, 0.0025510204
  %v543 = vmul.f32 %v539, 0.0025510204
  %v544 = vmul.f32 %v540, 0.0025510204
  %v545 = vmul.f32 %v541, 0.0025510204
  %v546 = vmul.f32 %v542, %v542
  %v547 = vmul.f32 %v543, %v543
  %v548 = vsub.f32 %v544, %v546
  %v549 = vsub.f32 %v545, %v547
  %v550 = vld [vmem:[%s3] sm:$0xff]
  %v551 = vld [vmem:[%s3 + $0x8] sm:$0xff]
  %v552 = vadd.f32 %v548, 1e-05
  %v553 = vadd.f32 %v549, 1e-05
  %v554 = vrsqrt.pop %v552
  %v555 = vrsqrt.pop %v553
  %v556 = vmul.f32 %v550, %v554
  %v557 = vmul.f32 %v551, %v555
  %v558 = vld [vmem:[%s4] sm:$0xff]
  %v559 = vld [vmem:[%s4 + $0x8] sm:$0xff]
  %v560 = vmul.f32 %v542, %v556
  %v561 = vmul.f32 %v543, %v557
  %v562 = vsub.f32 %v558, %v560
  %v563 = vsub.f32 %v559, %v561
  %v564 = vld [vmem:[%s5] sm:$0xff]
  %v565 = vld [vmem:[%s5 + $0x8] sm:$0xff]
  %567 = vset.pattern.permute.xlu0 0
  %568 = vperm.xlu0 %567, %v556
  %v569 = vpop.permute.xlu0 %568
  %572 = vset.pattern.permute.xlu0 0
  %573 = vperm.xlu0 %572, %v557
  %v574 = vpop.permute.xlu0 %573
  %v576 = vmul.f32 %v564, %v569
  %v577 = vmul.f32 %v565, %v574
  %579 = vset.pattern.permute.xlu0 0
  %580 = vperm.xlu0 %579, %v562
  %v581 = vpop.permute.xlu0 %580
  %584 = vset.pattern.permute.xlu0 0
  %585 = vperm.xlu0 %584, %v563
  %v586 = vpop.permute.xlu0 %585
  %v588 = vadd.f32 %v576, %v581
  %v589 = vadd.f32 %v577, %v586
  %v590 = vmax.f32 %v588, 0.0
  %v591 = vmax.f32 %v589, 0.0
  %592 = vst [vmem:[%s5] sm:$0xff] %v590
  %593 = vst [vmem:[%s5 + $0x8] sm:$0xff] %v591
  %v594 = vld [vmem:[%s261] sm:$0xff]
  %v595 = vld [vmem:[%s261 + $0x8] sm:$0xff]
  %v596 = vmul.f32 %v594, %v569
  %v597 = vmul.f32 %v595, %v574
  %v598 = vadd.f32 %v596, %v581
  %v599 = vadd.f32 %v597, %v586
  %v600 = vmax.f32 %v598, 0.0
  %v601 = vmax.f32 %v599, 0.0
  %602 = vst [vmem:[%s261] sm:$0xff] %v600
  %603 = vst [vmem:[%s261 + $0x8] sm:$0xff] %v601
  %v604 = vld [vmem:[%s393] sm:$0xff]
  %v605 = vld [vmem:[%s393 + $0x8] sm:$0xff]
  %v606 = vmul.f32 %v604, %v569
  %v607 = vmul.f32 %v605, %v574
  %v608 = vadd.f32 %v606, %v581
  %v609 = vadd.f32 %v607, %v586
  %v610 = vmax.f32 %v608, 0.0
  %v611 = vmax.f32 %v609, 0.0
  %612 = vst [vmem:[%s393] sm:$0xff] %v610
  %613 = vst [vmem:[%s393 + $0x8] sm:$0xff] %v611
  %v614 = vld [vmem:[%s525] sm:$0xff]
  %v615 = vld [vmem:[%s525 + $0x8] sm:$0xff]
  %v616 = vmul.f32 %v614, %v569
  %v617 = vmul.f32 %v615, %v574
  %v618 = vadd.f32 %v616, %v581
  %v619 = vadd.f32 %v617, %v586
  %v620 = vmax.f32 %v618, 0.0
  %v621 = vmax.f32 %v619, 0.0
  %622 = vst [vmem:[%s525] sm:$0xff] %v620
  %623 = vst [vmem:[%s525 + $0x8] sm:$0xff] %v621
  // Predicated region
  $region22: #{generator_forward.6} parent=0 // pred_check
    _
  $region23: #{generator_forward.6} parent=0 // pred_check_branch
    %625 = sbr.rel (0) target = $region25
  $region24: #{generator_forward.6} parent=0 // pred_region
    _
  $region25: #{generator_forward.6} parent=0 // pred_fallthru
    _
  // Predicated region
  $region26: #{generator_forward.6} parent=0 // pred_check
    _
  $region27: #{generator_forward.6} parent=0 // pred_check_branch
    %627 = sbr.rel (0) target = $region29
  $region28: #{generator_forward.6} parent=0 // pred_region
    _
  $region29: #{generator_forward.6} parent=0 // pred_fallthru
    _

// kernel: generator_forward.7
$region0: #{generator_forward.7}
  #allocation0 [shape = 'u32[]', space=smem, size = 0x4, offset = 0x4, fixed_abs, tag = 'smem constant byte address 0x4 - core index']
  #allocation1 [shape = 'u32[144,128]{1,0:T(1,128)}', space=vmem, size = 0x12000, scoped, tag = 'internal scratch']
  %s0 = inlined_call_operand.vmem [shape: bf16[4,8,64], index: 0, kind: input, shape index: {}]
  %s1 = inlined_call_operand.vmem [shape: bf16[4,64,512], index: 1, kind: input, shape index: {}]
  %s2 = inlined_call_operand.vmem [shape: f32[8,1], index: 2, kind: input, shape index: {}]
  %s3 = inlined_call_operand.vmem [shape: f32[8,1], index: 3, kind: input, shape index: {}]
  %s4 = inlined_call_operand.vmem [shape: f32[8,1], index: 4, kind: input, shape index: {}]
  %s5 = inlined_call_operand.vmem [shape: f32[4,8,512], index: 5, kind: output, shape index: {}]
  %s6 = sld [smem:[#allocation0]]
  $region30: #{generator_forward.7} parent=0
    _
  %s8 = ssub.s32 1, %s6
  %s9 = scalar_select 0, %s8, %s6
  // Predicated region
  $region2: #{generator_forward.7} parent=0 // pred_check
    _
  $region3: #{generator_forward.7} parent=0 // pred_check_branch
    %11 = sbr.rel (0) target = $region5
  $region4: #{generator_forward.7} parent=0 // pred_region
    _
  $region5: #{generator_forward.7} parent=0 // pred_fallthru
    _
  // Predicated region
  $region6: #{generator_forward.7} parent=0 // pred_check
    _
  $region7: #{generator_forward.7} parent=0 // pred_check_branch
    %13 = sbr.rel (0) target = $region9
  $region8: #{generator_forward.7} parent=0 // pred_region
    _
  $region9: #{generator_forward.7} parent=0 // pred_fallthru
    _
  // Predicated region
  $region10: #{generator_forward.7} parent=0 // pred_check
    _
  $region11: #{generator_forward.7} parent=0 // pred_check_branch
    %15 = sbr.rel (0) target = $region13
  $region12: #{generator_forward.7} parent=0 // pred_region
    _
  $region13: #{generator_forward.7} parent=0 // pred_fallthru
    _
  // Predicated region
  $region14: #{generator_forward.7} parent=0 // pred_check
    _
  $region15: #{generator_forward.7} parent=0 // pred_check_branch
    %17 = sbr.rel (0) target = $region17
  $region16: #{generator_forward.7} parent=0 // pred_region
    _
  $region17: #{generator_forward.7} parent=0 // pred_fallthru
    _
  // Predicated region
  $region18: #{generator_forward.7} parent=0 // pred_check
    _
  $region19: #{generator_forward.7} parent=0 // pred_check_branch
    %19 = sbr.rel (0) target = $region21
  $region20: #{generator_forward.7} parent=0 // pred_region
    _
  $region21: #{generator_forward.7} parent=0 // pred_fallthru
    _
  %v21 = vld [vmem:[%s0] sm:$0xf]
  %v22 = vld [vmem:[%s1] sm:$0xff]
  %v23 = vld [vmem:[%s1 + $0x8] sm:$0xff]
  %v24 = vld [vmem:[%s1 + $0x10] sm:$0xff]
  %v25 = vld [vmem:[%s1 + $0x18] sm:$0xff]
  %v26 = vld [vmem:[%s1 + $0x20] sm:$0xff]
  %v27 = vld [vmem:[%s1 + $0x28] sm:$0xff]
  %v28 = vld [vmem:[%s1 + $0x30] sm:$0xff]
  %v29 = vld [vmem:[%s1 + $0x38] sm:$0xff]
  %v30 = vld [vmem:[%s1 + $0x40] sm:$0xff]
  %v31 = vld [vmem:[%s1 + $0x48] sm:$0xff]
  %v32 = vld [vmem:[%s1 + $0x50] sm:$0xff]
  %v33 = vld [vmem:[%s1 + $0x58] sm:$0xff]
  %v34 = vld [vmem:[%s1 + $0x60] sm:$0xff]
  %v35 = vld [vmem:[%s1 + $0x68] sm:$0xff]
  %v36 = vld [vmem:[%s1 + $0x70] sm:$0xff]
  %v37 = vld [vmem:[%s1 + $0x78] sm:$0xff]
  %v38 = vld [vmem:[%s2] sm:$0xff]
  %40 = vset.pattern.permute.xlu0 0
  %41 = vperm.xlu0 %40, %v38
  %v42 = vpop.permute.xlu0 %41
  %v60 = vunpack.c.l.b16 %v22
  %v61 = vunpack.c.h.b16 %v22
  %v62 = vunpack.c.l.b16 %v23
  %v63 = vunpack.c.h.b16 %v23
  %v64 = vunpack.c.l.b16 %v24
  %v65 = vunpack.c.h.b16 %v24
  %v66 = vunpack.c.l.b16 %v25
  %v67 = vunpack.c.h.b16 %v25
  %v68 = vunpack.c.l.b16 %v26
  %v69 = vunpack.c.h.b16 %v26
  %v70 = vunpack.c.l.b16 %v27
  %v71 = vunpack.c.h.b16 %v27
  %v72 = vunpack.c.l.b16 %v28
  %v73 = vunpack.c.h.b16 %v28
  %v74 = vunpack.c.l.b16 %v29
  %v75 = vunpack.c.h.b16 %v29
  %v76 = vunpack.c.l.b16 %v30
  %v77 = vunpack.c.h.b16 %v30
  %v78 = vunpack.c.l.b16 %v31
  %v79 = vunpack.c.h.b16 %v31
  %v80 = vunpack.c.l.b16 %v32
  %v81 = vunpack.c.h.b16 %v32
  %v82 = vunpack.c.l.b16 %v33
  %v83 = vunpack.c.h.b16 %v33
  %v84 = vunpack.c.l.b16 %v34
  %v85 = vunpack.c.h.b16 %v34
  %v86 = vunpack.c.l.b16 %v35
  %v87 = vunpack.c.h.b16 %v35
  %v88 = vunpack.c.l.b16 %v36
  %v89 = vunpack.c.h.b16 %v36
  %v90 = vunpack.c.l.b16 %v37
  %v91 = vunpack.c.h.b16 %v37
  %v92 = vpack.c.b16 %v64, %v60
  %v93 = vpack.c.b16 %v65, %v61
  %v94 = vpack.c.b16 %v66, %v62
  %v95 = vpack.c.b16 %v67, %v63
  %v96 = vpack.c.b16 %v72, %v68
  %v97 = vpack.c.b16 %v73, %v69
  %v98 = vpack.c.b16 %v74, %v70
  %v99 = vpack.c.b16 %v75, %v71
  %v100 = vpack.c.b16 %v80, %v76
  %v101 = vpack.c.b16 %v81, %v77
  %v102 = vpack.c.b16 %v82, %v78
  %v103 = vpack.c.b16 %v83, %v79
  %v104 = vpack.c.b16 %v88, %v84
  %v105 = vpack.c.b16 %v89, %v85
  %v106 = vpack.c.b16 %v90, %v86
  %v107 = vpack.c.b16 %v91, %v87
  %vm124 = vcmask 523264
  %v126 = vsel %vm124, %v21, 0
  %128 = vmatprep.subr.bf16.mxu0 0
  %129 = vmatpush1.bf16.msra.mxu0 0
  %130 = vmatprep.subr.bf16.mxu0 0
  %131 = vmatpush1.bf16.msra.mxu0 0
  %132 = vmatprep.subr.bf16.mxu0 0
  %133 = vmatpush1.bf16.msra.mxu0 0
  %134 = vmatprep.subr.bf16.mxu0 0
  %135 = vmatpush1.bf16.msra.mxu0 0
  %136 = vmatprep.subr.bf16.mxu0 %v105
  %137 = vmatpush1.bf16.msra.mxu0 %v104
  %138 = vmatprep.subr.bf16.mxu0 %v101
  %139 = vmatpush1.bf16.msra.mxu0 %v100
  %140 = vmatprep.subr.bf16.mxu0 %v97
  %141 = vmatpush1.bf16.msra.mxu0 %v96
  %142 = vmatprep.subr.bf16.mxu0 %v93
  %143 = vmatpush1.bf16.msra.mxu0 %v92
  %144 = vmatprep.subr.bf16.mxu0 0
  %145 = vmatpush2.bf16.msra.mxu0 0
  %146 = vmatprep.subr.bf16.mxu0 0
  %147 = vmatpush2.bf16.msra.mxu0 0
  %148 = vmatprep.subr.bf16.mxu0 0
  %149 = vmatpush2.bf16.msra.mxu0 0
  %150 = vmatprep.subr.bf16.mxu0 0
  %151 = vmatpush2.bf16.msra.mxu0 0
  %152 = vmatprep.subr.bf16.mxu0 0
  %153 = vmatpush2.bf16.msra.mxu0 0
  %154 = vmatprep.subr.bf16.mxu0 0
  %155 = vmatpush2.bf16.msra.mxu0 0
  %156 = vmatprep.subr.bf16.mxu0 0
  %157 = vmatpush2.bf16.msra.mxu0 0
  %158 = vmatprep.subr.bf16.mxu0 0
  %159 = vmatpush2.bf16.msra.mxu0 0
  %160 = vmatprep.mubr.bf16.mxu0 0
  %161 = vmatmul.mubr.bf16.gmra.mxu0 %v126
  %v162 = vpop.f32.mrf.mxu0
  %v163 = vadd.f32 %v42, %v162
  %v164 = vpop.f32.mrf.mxu0
  %v165 = vadd.f32 %v42, %v164
  %v166 = vpop.f32.mrf.mxu0
  %v167 = vpop.f32.mrf.mxu0
  %168 = vdwg.mxu0
  %169 = vmatprep.subr.bf16.mxu0 0
  %170 = vmatpush1.bf16.msra.mxu0 0
  %171 = vmatprep.subr.bf16.mxu0 0
  %172 = vmatpush1.bf16.msra.mxu0 0
  %173 = vmatprep.subr.bf16.mxu0 0
  %174 = vmatpush1.bf16.msra.mxu0 0
  %175 = vmatprep.subr.bf16.mxu0 0
  %176 = vmatpush1.bf16.msra.mxu0 0
  %177 = vmatprep.subr.bf16.mxu0 %v107
  %178 = vmatpush1.bf16.msra.mxu0 %v106
  %179 = vmatprep.subr.bf16.mxu0 %v103
  %180 = vmatpush1.bf16.msra.mxu0 %v102
  %181 = vmatprep.subr.bf16.mxu0 %v99
  %182 = vmatpush1.bf16.msra.mxu0 %v98
  %183 = vmatprep.subr.bf16.mxu0 %v95
  %184 = vmatpush1.bf16.msra.mxu0 %v94
  %185 = vmatprep.subr.bf16.mxu0 0
  %186 = vmatpush2.bf16.msra.mxu0 0
  %187 = vmatprep.subr.bf16.mxu0 0
  %188 = vmatpush2.bf16.msra.mxu0 0
  %189 = vmatprep.subr.bf16.mxu0 0
  %190 = vmatpush2.bf16.msra.mxu0 0
  %191 = vmatprep.subr.bf16.mxu0 0
  %192 = vmatpush2.bf16.msra.mxu0 0
  %193 = vmatprep.subr.bf16.mxu0 0
  %194 = vmatpush2.bf16.msra.mxu0 0
  %195 = vmatprep.subr.bf16.mxu0 0
  %196 = vmatpush2.bf16.msra.mxu0 0
  %197 = vmatprep.subr.bf16.mxu0 0
  %198 = vmatpush2.bf16.msra.mxu0 0
  %199 = vmatprep.subr.bf16.mxu0 0
  %200 = vmatpush2.bf16.msra.mxu0 0
  %201 = vmatprep.mubr.bf16.mxu0 0
  %202 = vmatmul.mubr.bf16.gmra.mxu0 %v126
  %v203 = vpop.f32.mrf.mxu0
  %v204 = vadd.f32 %v42, %v203
  %v205 = vpop.f32.mrf.mxu0
  %v206 = vadd.f32 %v42, %v205
  %v207 = vpop.f32.mrf.mxu0
  %v208 = vpop.f32.mrf.mxu0
  %209 = vdwg.mxu0
  %v210 = vtanh.pop %v163
  %v211 = vtanh.pop %v165
  %v212 = vtanh.pop %v204
  %v213 = vtanh.pop %v206
  %214 = vst [vmem:[%s5] sm:$0xff] %v210
  %215 = vst [vmem:[%s5 + $0x8] sm:$0xff] %v211
  %216 = vst [vmem:[%s5 + $0x10] sm:$0xff] %v212
  %217 = vst [vmem:[%s5 + $0x18] sm:$0xff] %v213
  %s218 = scalar_lea.vmem %s0, 4
  %v219 = vld [vmem:[%s218] sm:$0xf]
  %s220 = scalar_lea.vmem %s1, 128
  %v221 = vld [vmem:[%s220] sm:$0xff]
  %v222 = vld [vmem:[%s220 + $0x8] sm:$0xff]
  %v223 = vld [vmem:[%s220 + $0x10] sm:$0xff]
  %v224 = vld [vmem:[%s220 + $0x18] sm:$0xff]
  %v225 = vld [vmem:[%s220 + $0x20] sm:$0xff]
  %v226 = vld [vmem:[%s220 + $0x28] sm:$0xff]
  %v227 = vld [vmem:[%s220 + $0x30] sm:$0xff]
  %v228 = vld [vmem:[%s220 + $0x38] sm:$0xff]
  %v229 = vld [vmem:[%s220 + $0x40] sm:$0xff]
  %v230 = vld [vmem:[%s220 + $0x48] sm:$0xff]
  %v231 = vld [vmem:[%s220 + $0x50] sm:$0xff]
  %v232 = vld [vmem:[%s220 + $0x58] sm:$0xff]
  %v233 = vld [vmem:[%s220 + $0x60] sm:$0xff]
  %v234 = vld [vmem:[%s220 + $0x68] sm:$0xff]
  %v235 = vld [vmem:[%s220 + $0x70] sm:$0xff]
  %v236 = vld [vmem:[%s220 + $0x78] sm:$0xff]
  %v237 = vld [vmem:[%s2] sm:$0xff]
  %239 = vset.pattern.permute.xlu0 0
  %240 = vperm.xlu0 %239, %v237
  %v241 = vpop.permute.xlu0 %240
  %v259 = vunpack.c.l.b16 %v221
  %v260 = vunpack.c.h.b16 %v221
  %v261 = vunpack.c.l.b16 %v222
  %v262 = vunpack.c.h.b16 %v222
  %v263 = vunpack.c.l.b16 %v223
  %v264 = vunpack.c.h.b16 %v223
  %v265 = vunpack.c.l.b16 %v224
  %v266 = vunpack.c.h.b16 %v224
  %v267 = vunpack.c.l.b16 %v225
  %v268 = vunpack.c.h.b16 %v225
  %v269 = vunpack.c.l.b16 %v226
  %v270 = vunpack.c.h.b16 %v226
  %v271 = vunpack.c.l.b16 %v227
  %v272 = vunpack.c.h.b16 %v227
  %v273 = vunpack.c.l.b16 %v228
  %v274 = vunpack.c.h.b16 %v228
  %v275 = vunpack.c.l.b16 %v229
  %v276 = vunpack.c.h.b16 %v229
  %v277 = vunpack.c.l.b16 %v230
  %v278 = vunpack.c.h.b16 %v230
  %v279 = vunpack.c.l.b16 %v231
  %v280 = vunpack.c.h.b16 %v231
  %v281 = vunpack.c.l.b16 %v232
  %v282 = vunpack.c.h.b16 %v232
  %v283 = vunpack.c.l.b16 %v233
  %v284 = vunpack.c.h.b16 %v233
  %v285 = vunpack.c.l.b16 %v234
  %v286 = vunpack.c.h.b16 %v234
  %v287 = vunpack.c.l.b16 %v235
  %v288 = vunpack.c.h.b16 %v235
  %v289 = vunpack.c.l.b16 %v236
  %v290 = vunpack.c.h.b16 %v236
  %v291 = vpack.c.b16 %v263, %v259
  %v292 = vpack.c.b16 %v264, %v260
  %v293 = vpack.c.b16 %v265, %v261
  %v294 = vpack.c.b16 %v266, %v262
  %v295 = vpack.c.b16 %v271, %v267
  %v296 = vpack.c.b16 %v272, %v268
  %v297 = vpack.c.b16 %v273, %v269
  %v298 = vpack.c.b16 %v274, %v270
  %v299 = vpack.c.b16 %v279, %v275
  %v300 = vpack.c.b16 %v280, %v276
  %v301 = vpack.c.b16 %v281, %v277
  %v302 = vpack.c.b16 %v282, %v278
  %v303 = vpack.c.b16 %v287, %v283
  %v304 = vpack.c.b16 %v288, %v284
  %v305 = vpack.c.b16 %v289, %v285
  %v306 = vpack.c.b16 %v290, %v286
  %v324 = vsel %vm124, %v219, 0
  %326 = vmatprep.subr.bf16.mxu0 0
  %327 = vmatpush1.bf16.msra.mxu0 0
  %328 = vmatprep.subr.bf16.mxu0 0
  %329 = vmatpush1.bf16.msra.mxu0 0
  %330 = vmatprep.subr.bf16.mxu0 0
  %331 = vmatpush1.bf16.msra.mxu0 0
  %332 = vmatprep.subr.bf16.mxu0 0
  %333 = vmatpush1.bf16.msra.mxu0 0
  %334 = vmatprep.subr.bf16.mxu0 %v304
  %335 = vmatpush1.bf16.msra.mxu0 %v303
  %336 = vmatprep.subr.bf16.mxu0 %v300
  %337 = vmatpush1.bf16.msra.mxu0 %v299
  %338 = vmatprep.subr.bf16.mxu0 %v296
  %339 = vmatpush1.bf16.msra.mxu0 %v295
  %340 = vmatprep.subr.bf16.mxu0 %v292
  %341 = vmatpush1.bf16.msra.mxu0 %v291
  %342 = vmatprep.subr.bf16.mxu0 0
  %343 = vmatpush2.bf16.msra.mxu0 0
  %344 = vmatprep.subr.bf16.mxu0 0
  %345 = vmatpush2.bf16.msra.mxu0 0
  %346 = vmatprep.subr.bf16.mxu0 0
  %347 = vmatpush2.bf16.msra.mxu0 0
  %348 = vmatprep.subr.bf16.mxu0 0
  %349 = vmatpush2.bf16.msra.mxu0 0
  %350 = vmatprep.subr.bf16.mxu0 0
  %351 = vmatpush2.bf16.msra.mxu0 0
  %352 = vmatprep.subr.bf16.mxu0 0
  %353 = vmatpush2.bf16.msra.mxu0 0
  %354 = vmatprep.subr.bf16.mxu0 0
  %355 = vmatpush2.bf16.msra.mxu0 0
  %356 = vmatprep.subr.bf16.mxu0 0
  %357 = vmatpush2.bf16.msra.mxu0 0
  %358 = vmatprep.mubr.bf16.mxu0 0
  %359 = vmatmul.mubr.bf16.gmra.mxu0 %v324
  %v360 = vpop.f32.mrf.mxu0
  %v361 = vadd.f32 %v241, %v360
  %v362 = vpop.f32.mrf.mxu0
  %v363 = vadd.f32 %v241, %v362
  %v364 = vpop.f32.mrf.mxu0
  %v365 = vpop.f32.mrf.mxu0
  %366 = vdwg.mxu0
  %367 = vmatprep.subr.bf16.mxu0 0
  %368 = vmatpush1.bf16.msra.mxu0 0
  %369 = vmatprep.subr.bf16.mxu0 0
  %370 = vmatpush1.bf16.msra.mxu0 0
  %371 = vmatprep.subr.bf16.mxu0 0
  %372 = vmatpush1.bf16.msra.mxu0 0
  %373 = vmatprep.subr.bf16.mxu0 0
  %374 = vmatpush1.bf16.msra.mxu0 0
  %375 = vmatprep.subr.bf16.mxu0 %v306
  %376 = vmatpush1.bf16.msra.mxu0 %v305
  %377 = vmatprep.subr.bf16.mxu0 %v302
  %378 = vmatpush1.bf16.msra.mxu0 %v301
  %379 = vmatprep.subr.bf16.mxu0 %v298
  %380 = vmatpush1.bf16.msra.mxu0 %v297
  %381 = vmatprep.subr.bf16.mxu0 %v294
  %382 = vmatpush1.bf16.msra.mxu0 %v293
  %383 = vmatprep.subr.bf16.mxu0 0
  %384 = vmatpush2.bf16.msra.mxu0 0
  %385 = vmatprep.subr.bf16.mxu0 0
  %386 = vmatpush2.bf16.msra.mxu0 0
  %387 = vmatprep.subr.bf16.mxu0 0
  %388 = vmatpush2.bf16.msra.mxu0 0
  %389 = vmatprep.subr.bf16.mxu0 0
  %390 = vmatpush2.bf16.msra.mxu0 0
  %391 = vmatprep.subr.bf16.mxu0 0
  %392 = vmatpush2.bf16.msra.mxu0 0
  %393 = vmatprep.subr.bf16.mxu0 0
  %394 = vmatpush2.bf16.msra.mxu0 0
  %395 = vmatprep.subr.bf16.mxu0 0
  %396 = vmatpush2.bf16.msra.mxu0 0
  %397 = vmatprep.subr.bf16.mxu0 0
  %398 = vmatpush2.bf16.msra.mxu0 0
  %399 = vmatprep.mubr.bf16.mxu0 0
  %400 = vmatmul.mubr.bf16.gmra.mxu0 %v324
  %v401 = vpop.f32.mrf.mxu0
  %v402 = vadd.f32 %v241, %v401
  %v403 = vpop.f32.mrf.mxu0
  %v404 = vadd.f32 %v241, %v403
  %v405 = vpop.f32.mrf.mxu0
  %v406 = vpop.f32.mrf.mxu0
  %407 = vdwg.mxu0
  %v408 = vtanh.pop %v361
  %v409 = vtanh.pop %v363
  %v410 = vtanh.pop %v402
  %v411 = vtanh.pop %v404
  %s412 = scalar_lea.vmem %s5, 32
  %413 = vst [vmem:[%s412] sm:$0xff] %v408
  %414 = vst [vmem:[%s412 + $0x8] sm:$0xff] %v409
  %415 = vst [vmem:[%s412 + $0x10] sm:$0xff] %v410
  %416 = vst [vmem:[%s412 + $0x18] sm:$0xff] %v411
  %s417 = scalar_lea.vmem %s0, 8
  %v418 = vld [vmem:[%s417] sm:$0xf]
  %s419 = scalar_lea.vmem %s1, 256
  %v420 = vld [vmem:[%s419] sm:$0xff]
  %v421 = vld [vmem:[%s419 + $0x8] sm:$0xff]
  %v422 = vld [vmem:[%s419 + $0x10] sm:$0xff]
  %v423 = vld [vmem:[%s419 + $0x18] sm:$0xff]
  %v424 = vld [vmem:[%s419 + $0x20] sm:$0xff]
  %v425 = vld [vmem:[%s419 + $0x28] sm:$0xff]
  %v426 = vld [vmem:[%s419 + $0x30] sm:$0xff]
  %v427 = vld [vmem:[%s419 + $0x38] sm:$0xff]
  %v428 = vld [vmem:[%s419 + $0x40] sm:$0xff]
  %v429 = vld [vmem:[%s419 + $0x48] sm:$0xff]
  %v430 = vld [vmem:[%s419 + $0x50] sm:$0xff]
  %v431 = vld [vmem:[%s419 + $0x58] sm:$0xff]
  %v432 = vld [vmem:[%s419 + $0x60] sm:$0xff]
  %v433 = vld [vmem:[%s419 + $0x68] sm:$0xff]
  %v434 = vld [vmem:[%s419 + $0x70] sm:$0xff]
  %v435 = vld [vmem:[%s419 + $0x78] sm:$0xff]
  %v436 = vld [vmem:[%s2] sm:$0xff]
  %438 = vset.pattern.permute.xlu0 0
  %439 = vperm.xlu0 %438, %v436
  %v440 = vpop.permute.xlu0 %439
  %v458 = vunpack.c.l.b16 %v420
  %v459 = vunpack.c.h.b16 %v420
  %v460 = vunpack.c.l.b16 %v421
  %v461 = vunpack.c.h.b16 %v421
  %v462 = vunpack.c.l.b16 %v422
  %v463 = vunpack.c.h.b16 %v422
  %v464 = vunpack.c.l.b16 %v423
  %v465 = vunpack.c.h.b16 %v423
  %v466 = vunpack.c.l.b16 %v424
  %v467 = vunpack.c.h.b16 %v424
  %v468 = vunpack.c.l.b16 %v425
  %v469 = vunpack.c.h.b16 %v425
  %v470 = vunpack.c.l.b16 %v426
  %v471 = vunpack.c.h.b16 %v426
  %v472 = vunpack.c.l.b16 %v427
  %v473 = vunpack.c.h.b16 %v427
  %v474 = vunpack.c.l.b16 %v428
  %v475 = vunpack.c.h.b16 %v428
  %v476 = vunpack.c.l.b16 %v429
  %v477 = vunpack.c.h.b16 %v429
  %v478 = vunpack.c.l.b16 %v430
  %v479 = vunpack.c.h.b16 %v430
  %v480 = vunpack.c.l.b16 %v431
  %v481 = vunpack.c.h.b16 %v431
  %v482 = vunpack.c.l.b16 %v432
  %v483 = vunpack.c.h.b16 %v432
  %v484 = vunpack.c.l.b16 %v433
  %v485 = vunpack.c.h.b16 %v433
  %v486 = vunpack.c.l.b16 %v434
  %v487 = vunpack.c.h.b16 %v434
  %v488 = vunpack.c.l.b16 %v435
  %v489 = vunpack.c.h.b16 %v435
  %v490 = vpack.c.b16 %v462, %v458
  %v491 = vpack.c.b16 %v463, %v459
  %v492 = vpack.c.b16 %v464, %v460
  %v493 = vpack.c.b16 %v465, %v461
  %v494 = vpack.c.b16 %v470, %v466
  %v495 = vpack.c.b16 %v471, %v467
  %v496 = vpack.c.b16 %v472, %v468
  %v497 = vpack.c.b16 %v473, %v469
  %v498 = vpack.c.b16 %v478, %v474
  %v499 = vpack.c.b16 %v479, %v475
  %v500 = vpack.c.b16 %v480, %v476
  %v501 = vpack.c.b16 %v481, %v477
  %v502 = vpack.c.b16 %v486, %v482
  %v503 = vpack.c.b16 %v487, %v483
  %v504 = vpack.c.b16 %v488, %v484
  %v505 = vpack.c.b16 %v489, %v485
  %v523 = vsel %vm124, %v418, 0
  %525 = vmatprep.subr.bf16.mxu0 0
  %526 = vmatpush1.bf16.msra.mxu0 0
  %527 = vmatprep.subr.bf16.mxu0 0
  %528 = vmatpush1.bf16.msra.mxu0 0
  %529 = vmatprep.subr.bf16.mxu0 0
  %530 = vmatpush1.bf16.msra.mxu0 0
  %531 = vmatprep.subr.bf16.mxu0 0
  %532 = vmatpush1.bf16.msra.mxu0 0
  %533 = vmatprep.subr.bf16.mxu0 %v503
  %534 = vmatpush1.bf16.msra.mxu0 %v502
  %535 = vmatprep.subr.bf16.mxu0 %v499
  %536 = vmatpush1.bf16.msra.mxu0 %v498
  %537 = vmatprep.subr.bf16.mxu0 %v495
  %538 = vmatpush1.bf16.msra.mxu0 %v494
  %539 = vmatprep.subr.bf16.mxu0 %v491
  %540 = vmatpush1.bf16.msra.mxu0 %v490
  %541 = vmatprep.subr.bf16.mxu0 0
  %542 = vmatpush2.bf16.msra.mxu0 0
  %543 = vmatprep.subr.bf16.mxu0 0
  %544 = vmatpush2.bf16.msra.mxu0 0
  %545 = vmatprep.subr.bf16.mxu0 0
  %546 = vmatpush2.bf16.msra.mxu0 0
  %547 = vmatprep.subr.bf16.mxu0 0
  %548 = vmatpush2.bf16.msra.mxu0 0
  %549 = vmatprep.subr.bf16.mxu0 0
  %550 = vmatpush2.bf16.msra.mxu0 0
  %551 = vmatprep.subr.bf16.mxu0 0
  %552 = vmatpush2.bf16.msra.mxu0 0
  %553 = vmatprep.subr.bf16.mxu0 0
  %554 = vmatpush2.bf16.msra.mxu0 0
  %555 = vmatprep.subr.bf16.mxu0 0
  %556 = vmatpush2.bf16.msra.mxu0 0
  %557 = vmatprep.mubr.bf16.mxu0 0
  %558 = vmatmul.mubr.bf16.gmra.mxu0 %v523
  %v559 = vpop.f32.mrf.mxu0
  %v560 = vadd.f32 %v440, %v559
  %v561 = vpop.f32.mrf.mxu0
  %v562 = vadd.f32 %v440, %v561
  %v563 = vpop.f32.mrf.mxu0
  %v564 = vpop.f32.mrf.mxu0
  %565 = vdwg.mxu0
  %566 = vmatprep.subr.bf16.mxu0 0
  %567 = vmatpush1.bf16.msra.mxu0 0
  %568 = vmatprep.subr.bf16.mxu0 0
  %569 = vmatpush1.bf16.msra.mxu0 0
  %570 = vmatprep.subr.bf16.mxu0 0
  %571 = vmatpush1.bf16.msra.mxu0 0
  %572 = vmatprep.subr.bf16.mxu0 0
  %573 = vmatpush1.bf16.msra.mxu0 0
  %574 = vmatprep.subr.bf16.mxu0 %v505
  %575 = vmatpush1.bf16.msra.mxu0 %v504
  %576 = vmatprep.subr.bf16.mxu0 %v501
  %577 = vmatpush1.bf16.msra.mxu0 %v500
  %578 = vmatprep.subr.bf16.mxu0 %v497
  %579 = vmatpush1.bf16.msra.mxu0 %v496
  %580 = vmatprep.subr.bf16.mxu0 %v493
  %581 = vmatpush1.bf16.msra.mxu0 %v492
  %582 = vmatprep.subr.bf16.mxu0 0
  %583 = vmatpush2.bf16.msra.mxu0 0
  %584 = vmatprep.subr.bf16.mxu0 0
  %585 = vmatpush2.bf16.msra.mxu0 0
  %586 = vmatprep.subr.bf16.mxu0 0
  %587 = vmatpush2.bf16.msra.mxu0 0
  %588 = vmatprep.subr.bf16.mxu0 0
  %589 = vmatpush2.bf16.msra.mxu0 0
  %590 = vmatprep.subr.bf16.mxu0 0
  %591 = vmatpush2.bf16.msra.mxu0 0
  %592 = vmatprep.subr.bf16.mxu0 0
  %593 = vmatpush2.bf16.msra.mxu0 0
  %594 = vmatprep.subr.bf16.mxu0 0
  %595 = vmatpush2.bf16.msra.mxu0 0
  %596 = vmatprep.subr.bf16.mxu0 0
  %597 = vmatpush2.bf16.msra.mxu0 0
  %598 = vmatprep.mubr.bf16.mxu0 0
  %599 = vmatmul.mubr.bf16.gmra.mxu0 %v523
  %v600 = vpop.f32.mrf.mxu0
  %v601 = vadd.f32 %v440, %v600
  %v602 = vpop.f32.mrf.mxu0
  %v603 = vadd.f32 %v440, %v602
  %v604 = vpop.f32.mrf.mxu0
  %v605 = vpop.f32.mrf.mxu0
  %606 = vdwg.mxu0
  %v607 = vtanh.pop %v560
  %v608 = vtanh.pop %v562
  %v609 = vtanh.pop %v601
  %v610 = vtanh.pop %v603
  %s611 = scalar_lea.vmem %s5, 64
  %612 = vst [vmem:[%s611] sm:$0xff] %v607
  %613 = vst [vmem:[%s611 + $0x8] sm:$0xff] %v608
  %614 = vst [vmem:[%s611 + $0x10] sm:$0xff] %v609
  %615 = vst [vmem:[%s611 + $0x18] sm:$0xff] %v610
  %s616 = scalar_lea.vmem %s0, 12
  %v617 = vld [vmem:[%s616] sm:$0xf]
  %s618 = scalar_lea.vmem %s1, 384
  %v619 = vld [vmem:[%s618] sm:$0xff]
  %v620 = vld [vmem:[%s618 + $0x8] sm:$0xff]
  %v621 = vld [vmem:[%s618 + $0x10] sm:$0xff]
  %v622 = vld [vmem:[%s618 + $0x18] sm:$0xff]
  %v623 = vld [vmem:[%s618 + $0x20] sm:$0xff]
  %v624 = vld [vmem:[%s618 + $0x28] sm:$0xff]
  %v625 = vld [vmem:[%s618 + $0x30] sm:$0xff]
  %v626 = vld [vmem:[%s618 + $0x38] sm:$0xff]
  %v627 = vld [vmem:[%s618 + $0x40] sm:$0xff]
  %v628 = vld [vmem:[%s618 + $0x48] sm:$0xff]
  %v629 = vld [vmem:[%s618 + $0x50] sm:$0xff]
  %v630 = vld [vmem:[%s618 + $0x58] sm:$0xff]
  %v631 = vld [vmem:[%s618 + $0x60] sm:$0xff]
  %v632 = vld [vmem:[%s618 + $0x68] sm:$0xff]
  %v633 = vld [vmem:[%s618 + $0x70] sm:$0xff]
  %v634 = vld [vmem:[%s618 + $0x78] sm:$0xff]
  %v635 = vld [vmem:[%s2] sm:$0xff]
  %637 = vset.pattern.permute.xlu0 0
  %638 = vperm.xlu0 %637, %v635
  %v639 = vpop.permute.xlu0 %638
  %v657 = vunpack.c.l.b16 %v619
  %v658 = vunpack.c.h.b16 %v619
  %v659 = vunpack.c.l.b16 %v620
  %v660 = vunpack.c.h.b16 %v620
  %v661 = vunpack.c.l.b16 %v621
  %v662 = vunpack.c.h.b16 %v621
  %v663 = vunpack.c.l.b16 %v622
  %v664 = vunpack.c.h.b16 %v622
  %v665 = vunpack.c.l.b16 %v623
  %v666 = vunpack.c.h.b16 %v623
  %v667 = vunpack.c.l.b16 %v624
  %v668 = vunpack.c.h.b16 %v624
  %v669 = vunpack.c.l.b16 %v625
  %v670 = vunpack.c.h.b16 %v625
  %v671 = vunpack.c.l.b16 %v626
  %v672 = vunpack.c.h.b16 %v626
  %v673 = vunpack.c.l.b16 %v627
  %v674 = vunpack.c.h.b16 %v627
  %v675 = vunpack.c.l.b16 %v628
  %v676 = vunpack.c.h.b16 %v628
  %v677 = vunpack.c.l.b16 %v629
  %v678 = vunpack.c.h.b16 %v629
  %v679 = vunpack.c.l.b16 %v630
  %v680 = vunpack.c.h.b16 %v630
  %v681 = vunpack.c.l.b16 %v631
  %v682 = vunpack.c.h.b16 %v631
  %v683 = vunpack.c.l.b16 %v632
  %v684 = vunpack.c.h.b16 %v632
  %v685 = vunpack.c.l.b16 %v633
  %v686 = vunpack.c.h.b16 %v633
  %v687 = vunpack.c.l.b16 %v634
  %v688 = vunpack.c.h.b16 %v634
  %v689 = vpack.c.b16 %v661, %v657
  %v690 = vpack.c.b16 %v662, %v658
  %v691 = vpack.c.b16 %v663, %v659
  %v692 = vpack.c.b16 %v664, %v660
  %v693 = vpack.c.b16 %v669, %v665
  %v694 = vpack.c.b16 %v670, %v666
  %v695 = vpack.c.b16 %v671, %v667
  %v696 = vpack.c.b16 %v672, %v668
  %v697 = vpack.c.b16 %v677, %v673
  %v698 = vpack.c.b16 %v678, %v674
  %v699 = vpack.c.b16 %v679, %v675
  %v700 = vpack.c.b16 %v680, %v676
  %v701 = vpack.c.b16 %v685, %v681
  %v702 = vpack.c.b16 %v686, %v682
  %v703 = vpack.c.b16 %v687, %v683
  %v704 = vpack.c.b16 %v688, %v684
  %v722 = vsel %vm124, %v617, 0
  %724 = vmatprep.subr.bf16.mxu0 0
  %725 = vmatpush1.bf16.msra.mxu0 0
  %726 = vmatprep.subr.bf16.mxu0 0
  %727 = vmatpush1.bf16.msra.mxu0 0
  %728 = vmatprep.subr.bf16.mxu0 0
  %729 = vmatpush1.bf16.msra.mxu0 0
  %730 = vmatprep.subr.bf16.mxu0 0
  %731 = vmatpush1.bf16.msra.mxu0 0
  %732 = vmatprep.subr.bf16.mxu0 %v702
  %733 = vmatpush1.bf16.msra.mxu0 %v701
  %734 = vmatprep.subr.bf16.mxu0 %v698
  %735 = vmatpush1.bf16.msra.mxu0 %v697
  %736 = vmatprep.subr.bf16.mxu0 %v694
  %737 = vmatpush1.bf16.msra.mxu0 %v693
  %738 = vmatprep.subr.bf16.mxu0 %v690
  %739 = vmatpush1.bf16.msra.mxu0 %v689
  %740 = vmatprep.subr.bf16.mxu0 0
  %741 = vmatpush2.bf16.msra.mxu0 0
  %742 = vmatprep.subr.bf16.mxu0 0
  %743 = vmatpush2.bf16.msra.mxu0 0
  %744 = vmatprep.subr.bf16.mxu0 0
  %745 = vmatpush2.bf16.msra.mxu0 0
  %746 = vmatprep.subr.bf16.mxu0 0
  %747 = vmatpush2.bf16.msra.mxu0 0
  %748 = vmatprep.subr.bf16.mxu0 0
  %749 = vmatpush2.bf16.msra.mxu0 0
  %750 = vmatprep.subr.bf16.mxu0 0
  %751 = vmatpush2.bf16.msra.mxu0 0
  %752 = vmatprep.subr.bf16.mxu0 0
  %753 = vmatpush2.bf16.msra.mxu0 0
  %754 = vmatprep.subr.bf16.mxu0 0
  %755 = vmatpush2.bf16.msra.mxu0 0
  %756 = vmatprep.mubr.bf16.mxu0 0
  %757 = vmatmul.mubr.bf16.gmra.mxu0 %v722
  %v758 = vpop.f32.mrf.mxu0
  %v759 = vadd.f32 %v639, %v758
  %v760 = vpop.f32.mrf.mxu0
  %v761 = vadd.f32 %v639, %v760
  %v762 = vpop.f32.mrf.mxu0
  %v763 = vpop.f32.mrf.mxu0
  %764 = vdwg.mxu0
  %765 = vmatprep.subr.bf16.mxu0 0
  %766 = vmatpush1.bf16.msra.mxu0 0
  %767 = vmatprep.subr.bf16.mxu0 0
  %768 = vmatpush1.bf16.msra.mxu0 0
  %769 = vmatprep.subr.bf16.mxu0 0
  %770 = vmatpush1.bf16.msra.mxu0 0
  %771 = vmatprep.subr.bf16.mxu0 0
  %772 = vmatpush1.bf16.msra.mxu0 0
  %773 = vmatprep.subr.bf16.mxu0 %v704
  %774 = vmatpush1.bf16.msra.mxu0 %v703
  %775 = vmatprep.subr.bf16.mxu0 %v700
  %776 = vmatpush1.bf16.msra.mxu0 %v699
  %777 = vmatprep.subr.bf16.mxu0 %v696
  %778 = vmatpush1.bf16.msra.mxu0 %v695
  %779 = vmatprep.subr.bf16.mxu0 %v692
  %780 = vmatpush1.bf16.msra.mxu0 %v691
  %781 = vmatprep.subr.bf16.mxu0 0
  %782 = vmatpush2.bf16.msra.mxu0 0
  %783 = vmatprep.subr.bf16.mxu0 0
  %784 = vmatpush2.bf16.msra.mxu0 0
  %785 = vmatprep.subr.bf16.mxu0 0
  %786 = vmatpush2.bf16.msra.mxu0 0
  %787 = vmatprep.subr.bf16.mxu0 0
  %788 = vmatpush2.bf16.msra.mxu0 0
  %789 = vmatprep.subr.bf16.mxu0 0
  %790 = vmatpush2.bf16.msra.mxu0 0
  %791 = vmatprep.subr.bf16.mxu0 0
  %792 = vmatpush2.bf16.msra.mxu0 0
  %793 = vmatprep.subr.bf16.mxu0 0
  %794 = vmatpush2.bf16.msra.mxu0 0
  %795 = vmatprep.subr.bf16.mxu0 0
  %796 = vmatpush2.bf16.msra.mxu0 0
  %797 = vmatprep.mubr.bf16.mxu0 0
  %798 = vmatmul.mubr.bf16.gmra.mxu0 %v722
  %v799 = vpop.f32.mrf.mxu0
  %v800 = vadd.f32 %v639, %v799
  %v801 = vpop.f32.mrf.mxu0
  %v802 = vadd.f32 %v639, %v801
  %v803 = vpop.f32.mrf.mxu0
  %v804 = vpop.f32.mrf.mxu0
  %805 = vdwg.mxu0
  %v806 = vtanh.pop %v759
  %v807 = vtanh.pop %v761
  %v808 = vtanh.pop %v800
  %v809 = vtanh.pop %v802
  %s810 = scalar_lea.vmem %s5, 96
  %811 = vst [vmem:[%s810] sm:$0xff] %v806
  %812 = vst [vmem:[%s810 + $0x8] sm:$0xff] %v807
  %813 = vst [vmem:[%s810 + $0x10] sm:$0xff] %v808
  %814 = vst [vmem:[%s810 + $0x18] sm:$0xff] %v809
  // Predicated region
  $region22: #{generator_forward.7} parent=0 // pred_check
    _
  $region23: #{generator_forward.7} parent=0 // pred_check_branch
    %816 = sbr.rel (0) target = $region25
  $region24: #{generator_forward.7} parent=0 // pred_region
    _
  $region25: #{generator_forward.7} parent=0 // pred_fallthru
    _
  // Predicated region
  $region26: #{generator_forward.7} parent=0 // pred_check
    _
  $region27: #{generator_forward.7} parent=0 // pred_check_branch
    %818 = sbr.rel (0) target = $region29
  $region28: #{generator_forward.7} parent=0 // pred_region
    _
  $region29: #{generator_forward.7} parent=0 // pred_fallthru
    _

</llo_original>
